<compile_context>
chip_gen: v7x
topology: tpu7x:2x2x1
jax: 0.10.0
libtpu: 0.0.40
codegen_flags: <defaults>
</compile_context>

<pallas_src>
from functools import partial

import jax
import jax.numpy as jnp
from jax import lax
from jax.experimental import pallas as pl
from jax.experimental.pallas import tpu as pltpu


def _hswish(x):
    # PyTorch nn.Hardswish: x * relu6(x + 3) / 6
    return x * jnp.clip(x + 3.0, 0.0, 6.0) * (1.0 / 6.0)


# ---------------------------------------------------------------------------
# Fused kernel: stem conv (im2col matmul + bias + hswish) followed by `depth`
# residual DSConv blocks, activation resident in (C, Ho*Wo) lane-dense layout.
# ---------------------------------------------------------------------------
def fused_stem_kernel(patches_ref,   # (1, 9*Cin, HW)   im2col of the input
                      wstem_ref,     # (C, 9*Cin)       BN-scale-folded stem weight
                      bstem_ref,     # (C, 1)           folded stem BN bias
                      dwmask_ref,    # (9, HW)          0/1 border masks per 3x3 tap
                      wdw_ref,       # (depth*9, C, 1)  BN-scale-folded depthwise taps
                      bdw_ref,       # (depth, C, 1)    folded depthwise BN bias
                      wpw_ref,       # (depth, C, C)    BN-scale-folded pointwise (co,ci)
                      bpw_ref,       # (depth, C, 1)    folded pointwise BN bias
                      o_ref,         # (1, C, HW)
                      *, Wo):
    HW = o_ref.shape[2]
    depth = bdw_ref.shape[0]

    # --- Stem: one MXU matmul over K = 9*Cin, then bias + hardswish. -------
    y = jnp.dot(wstem_ref[...], patches_ref[0],
                preferred_element_type=jnp.float32)            # (C, HW)
    y = _hswish(y + bstem_ref[...])

    # --- depth x residual DSConv blocks (static unroll; depth is tiny). ----
    for d in range(depth):
        base = d * 9
        # Depthwise 3x3 via lane rotations: tap (kh, kw) reads flat index
        # idx + dh*Wo + dw; border (zero-padding) handled by the 0/1 mask.
        acc = y * wdw_ref[base + 4]                # center tap: no shift/mask
        for k in range(9):
            if k == 4:
                continue
            dh, dw = k // 3 - 1, k % 3 - 1
            shift = (-(dh * Wo + dw)) % HW         # static rotate amount
            v = pltpu.roll(y, shift=shift, axis=1)  # XLU, off the VALU slot
            acc = acc + (v * dwmask_ref[k]) * wdw_ref[base + k]
        t = _hswish(acc + bdw_ref[d])              # dw BN bias + act
        z = jnp.dot(wpw_ref[d], t,
                    preferred_element_type=jnp.float32)        # pointwise 1x1
        y = y + z + bpw_ref[d]                     # pw BN bias + identity resid

    o_ref[0] = y.astype(o_ref.dtype)               # dense (lane-packed) store


# ---------------------------------------------------------------------------
# Wrapper: NCHW im2col (no layout transposes), BN-scale folding, border masks,
# and the single pallas_call.
# ---------------------------------------------------------------------------
def _rep_spec(shape):
    nz = (0,) * len(shape)
    return pl.BlockSpec(shape, lambda n, _z=nz: _z)


def input_stem_forward(x_nchw, params):
    w_stem, s_stem, b_stem = params["stem"]
    blocks = list(params["blocks"])

    N, Cin, H, W = x_nchw.shape
    Cout = w_stem.shape[-1]
    Ho, Wo = H // 2, W // 2
    HW = Ho * Wo

    # depth == 0 guard: an all-zero residual block is an exact no-op.
    if not blocks:
        zc = jnp.zeros((Cout,), jnp.float32)
        blocks = [(jnp.zeros((3, 3, 1, Cout), jnp.float32), zc, zc,
                   jnp.zeros((Cout, Cout), jnp.float32), zc, zc)]
    depth = len(blocks)

    # --- im2col of the stride-2 3x3 stem conv, directly from NCHW ----------
    xp = jnp.pad(x_nchw, ((0, 0), (0, 0), (1, 1), (1, 1)))
    cols = [xp[:, :, kh:kh + 2 * Ho:2, kw:kw + 2 * Wo:2]       # (N,Cin,Ho,Wo)
            for kh in range(3) for kw in range(3)]
    patches = jnp.stack(cols, axis=1).reshape(N, 9 * Cin, HW)  # k-major, ci-minor

    # --- Fold BN scales into the conv weights; only biases stay in-kernel ---
    wstem_t = jnp.transpose(w_stem, (3, 0, 1, 2)).reshape(Cout, 9 * Cin)
    wstem_t = wstem_t * s_stem[:, None]                        # (C, 9*Cin)
    bstem = b_stem.reshape(Cout, 1)

    wdw_all = jnp.stack([(b[0][:, :, 0, :] * b[1]).reshape(9, Cout)
                         for b in blocks])                     # (depth, 9, C)
    wdw_all = wdw_all.reshape(depth * 9, Cout)[:, :, None]     # (depth*9, C, 1)
    bdw_all = jnp.stack([b[2] for b in blocks])[:, :, None]    # (depth, C, 1)
    wpw_all = jnp.stack([b[3].T * b[4][:, None] for b in blocks])  # (depth, C, C)
    bpw_all = jnp.stack([b[5] for b in blocks])[:, :, None]    # (depth, C, 1)

    # --- 0/1 border masks (zero-padding semantics) for the 9 dw taps -------
    idx = jnp.arange(HW, dtype=jnp.int32)
    h_idx, w_idx = idx // Wo, idx % Wo
    masks = []
    for kh in range(3):
        for kw in range(3):
            dh, dw = kh - 1, kw - 1
            valid = ((h_idx + dh >= 0) & (h_idx + dh < Ho) &
                     (w_idx + dw >= 0) & (w_idx + dw < Wo))
            masks.append(valid.astype(jnp.float32))
    dwmask = jnp.stack(masks)                                  # (9, HW)

    y = pl.pallas_call(
        partial(fused_stem_kernel, Wo=Wo),
        out_shape=jax.ShapeDtypeStruct((N, Cout, HW), x_nchw.dtype),
        grid=(N,),
        in_specs=[
            pl.BlockSpec((1, 9 * Cin, HW), lambda n: (n, 0, 0)),
            _rep_spec((Cout, 9 * Cin)),
            _rep_spec((Cout, 1)),
            _rep_spec((9, HW)),
            _rep_spec((depth * 9, Cout, 1)),
            _rep_spec((depth, Cout, 1)),
            _rep_spec((depth, Cout, Cout)),
            _rep_spec((depth, Cout, 1)),
        ],
        out_specs=pl.BlockSpec((1, Cout, HW), lambda n: (n, 0, 0)),
        compiler_params=pltpu.CompilerParams(
            dimension_semantics=("parallel",),
            vmem_limit_bytes=32 * 1024 * 1024),
    )(patches, wstem_t, bstem, dwmask, wdw_all, bdw_all, wpw_all, bpw_all)

    # (N, C, Ho*Wo) -> (N, C, Ho, Wo): pure row-major reshape, no transpose.
    return y.reshape(N, Cout, Ho, Wo)


# ---------------------------------------------------------------------------
# Pure-JAX reference (for correctness assert)
# ---------------------------------------------------------------------------
def reference_forward(x_nchw, params):
    x = jnp.transpose(x_nchw, (0, 2, 3, 1))
    w, s, b = params["stem"]
    y = lax.conv_general_dilated(
        x, w, window_strides=(2, 2), padding=((1, 1), (1, 1)),
        dimension_numbers=("NHWC", "HWIO", "NHWC"))
    y = _hswish(y * s + b)
    for (wdw, sdw, bdw, wpw, spw, bpw) in params["blocks"]:
        C = y.shape[-1]
        z = lax.conv_general_dilated(
            y, wdw, window_strides=(1, 1), padding=((1, 1), (1, 1)),
            dimension_numbers=("NHWC", "HWIO", "NHWC"),
            feature_group_count=C)
        z = _hswish(z * sdw + bdw)
        z = jnp.einsum("nhwc,cd->nhwd", z, wpw)
        z = z * spw + bpw
        y = y + z
    return jnp.transpose(y, (0, 3, 1, 2))


def make_bn_fold(key, c):
    k1, k2, k3, k4 = jax.random.split(key, 4)
    gamma = 1.0 + 0.1 * jax.random.normal(k1, (c,), jnp.float32)
    beta = 0.05 * jax.random.normal(k2, (c,), jnp.float32)
    mean = 0.05 * jax.random.normal(k3, (c,), jnp.float32)
    var = 1.0 + 0.1 * jax.random.uniform(k4, (c,), jnp.float32)
    scale = gamma * lax.rsqrt(var + 1e-5)
    bias = beta - mean * scale
    return scale, bias


if __name__ == "__main__":
    # Small shapes consistent with the module: batch=2, in_channel=4,
    # out_channel=32, spatial=32x32, depth=2 (Ho*Wo = 256, lane-dense).
    N, Cin, H, W = 2, 4, 32, 32
    Cout, depth = 32, 2

    keys = jax.random.split(jax.random.PRNGKey(0), 8)
    x = jax.random.normal(keys[0], (N, Cin, H, W), jnp.float32)

    w_stem = 0.2 * jax.random.normal(keys[1], (3, 3, Cin, Cout), jnp.float32)
    s_stem, b_stem = make_bn_fold(keys[2], Cout)
    params = {"stem": (w_stem, s_stem, b_stem), "blocks": []}
    for d in range(depth):
        kd = jax.random.split(keys[3 + d], 4)
        wdw = 0.2 * jax.random.normal(kd[0], (3, 3, 1, Cout), jnp.float32)
        sdw, bdw = make_bn_fold(kd[1], Cout)
        wpw = 0.2 * jax.random.normal(kd[2], (Cout, Cout), jnp.float32)
        spw, bpw = make_bn_fold(kd[3], Cout)
        params["blocks"].append((wdw, sdw, bdw, wpw, spw, bpw))

    out = jax.block_until_ready(input_stem_forward(x, params))
    ref = jax.block_until_ready(reference_forward(x, params))

    assert out.shape == (N, Cout, H // 2, W // 2), out.shape
    max_err = float(jnp.max(jnp.abs(out - ref)))
    assert max_err < 1e-3, f"mismatch vs reference: max abs err = {max_err}"
    print("KERNEL_OK")
</pallas_src>

<mosaic_0001>
module attributes {stable_mosaic.version = 11 : i64} {
  func.func @fused_stem_kernel(%arg0: i32, %arg1: memref<1x36x256xf32, #tpu.memory_space<vmem>>, %arg2: memref<32x36xf32, #tpu.memory_space<vmem>>, %arg3: memref<32x1xf32, #tpu.memory_space<vmem>>, %arg4: memref<9x256xf32, #tpu.memory_space<vmem>>, %arg5: memref<18x32x1xf32, #tpu.memory_space<vmem>>, %arg6: memref<2x32x1xf32, #tpu.memory_space<vmem>>, %arg7: memref<2x32x32xf32, #tpu.memory_space<vmem>>, %arg8: memref<2x32x1xf32, #tpu.memory_space<vmem>>, %arg9: memref<1x32x256xf32, #tpu.memory_space<vmem>>) attributes {dimension_semantics = [#tpu.dimension_semantics<parallel>], iteration_bounds = array<i64: 2>, scalar_prefetch = 0 : i64, scratch_operands = 0 : i64, tpu.core_type = #tpu.core_type<tc>, window_params = [{transform_indices = @transform_0, window_bounds = array<i64: 1, 36, 256>}, {pipeline_mode = #tpu.pipeline_mode<synchronous>, transform_indices = @transform_1, window_bounds = array<i64: 32, 36>}, {pipeline_mode = #tpu.pipeline_mode<synchronous>, transform_indices = @transform_2, window_bounds = array<i64: 32, 1>}, {pipeline_mode = #tpu.pipeline_mode<synchronous>, transform_indices = @transform_3, window_bounds = array<i64: 9, 256>}, {pipeline_mode = #tpu.pipeline_mode<synchronous>, transform_indices = @transform_4, window_bounds = array<i64: 18, 32, 1>}, {pipeline_mode = #tpu.pipeline_mode<synchronous>, transform_indices = @transform_5, window_bounds = array<i64: 2, 32, 1>}, {pipeline_mode = #tpu.pipeline_mode<synchronous>, transform_indices = @transform_6, window_bounds = array<i64: 2, 32, 32>}, {pipeline_mode = #tpu.pipeline_mode<synchronous>, transform_indices = @transform_7, window_bounds = array<i64: 2, 32, 1>}, {transform_indices = @transform_8, window_bounds = array<i64: 1, 32, 256>}]} {
    %c0 = arith.constant 0 : index
    %c0_0 = arith.constant 0 : index
    %0 = vector.load %arg2[%c0, %c0_0] : memref<32x36xf32, #tpu.memory_space<vmem>>, vector<32x36xf32>
    %c0_1 = arith.constant 0 : index
    %c0_2 = arith.constant 0 : index
    %c0_3 = arith.constant 0 : index
    %1 = vector.load %arg1[%c0_1, %c0_2, %c0_3] : memref<1x36x256xf32, #tpu.memory_space<vmem>>, vector<1x36x256xf32>
    %2 = vector.shape_cast %1 : vector<1x36x256xf32> to vector<36x256xf32>
    %cst = arith.constant dense<0.000000e+00> : vector<32x256xf32>
    %3 = tpu.matmul %0, %2, %cst {dimension_numbers = #tpu.dot_dimension_numbers<[1], [0], [0], [1], [0, 0, 1, 1], [], []>} : vector<32x36xf32>, vector<36x256xf32>, vector<32x256xf32> -> vector<32x256xf32>
    %c0_4 = arith.constant 0 : index
    %c0_5 = arith.constant 0 : index
    %4 = vector.load %arg3[%c0_4, %c0_5] : memref<32x1xf32, #tpu.memory_space<vmem>>, vector<32x1xf32>
    %5 = vector.broadcast %4 : vector<32x1xf32> to vector<32x256xf32>
    %6 = arith.addf %3, %5 : vector<32x256xf32>
    %cst_6 = arith.constant 3.000000e+00 : f32
    %7 = vector.broadcast %cst_6 : f32 to vector<32x256xf32>
    %8 = arith.addf %6, %7 : vector<32x256xf32>
    %cst_7 = arith.constant 0.000000e+00 : f32
    %cst_8 = arith.constant 6.000000e+00 : f32
    %9 = vector.broadcast %cst_7 : f32 to vector<32x256xf32>
    %10 = arith.maximumf %9, %8 : vector<32x256xf32>
    %11 = vector.broadcast %cst_8 : f32 to vector<32x256xf32>
    %12 = arith.minimumf %11, %10 : vector<32x256xf32>
    %13 = arith.mulf %6, %12 : vector<32x256xf32>
    %cst_9 = arith.constant 0.166666672 : f32
    %14 = vector.broadcast %cst_9 : f32 to vector<32x256xf32>
    %15 = arith.mulf %13, %14 : vector<32x256xf32>
    %c4 = arith.constant 4 : index
    %c0_10 = arith.constant 0 : index
    %c0_11 = arith.constant 0 : index
    %16 = vector.load %arg5[%c4, %c0_10, %c0_11] : memref<18x32x1xf32, #tpu.memory_space<vmem>>, vector<1x32x1xf32>
    %17 = vector.shape_cast %16 : vector<1x32x1xf32> to vector<32x1xf32>
    %18 = vector.broadcast %17 : vector<32x1xf32> to vector<32x256xf32>
    %19 = arith.mulf %15, %18 : vector<32x256xf32>
    %c17_i32 = arith.constant 17 : i32
    %20 = tpu.dynamic_rotate %15 by %c17_i32 dim 1 : vector<32x256xf32>, i32 -> vector<32x256xf32>
    %c0_12 = arith.constant 0 : index
    %c0_13 = arith.constant 0 : index
    %21 = vector.load %arg4[%c0_12, %c0_13] : memref<9x256xf32, #tpu.memory_space<vmem>>, vector<1x256xf32>
    %22 = vector.shape_cast %21 : vector<1x256xf32> to vector<256xf32>
    %23 = vector.shape_cast %22 : vector<256xf32> to vector<1x256xf32>
    %24 = vector.broadcast %23 : vector<1x256xf32> to vector<32x256xf32>
    %25 = arith.mulf %20, %24 : vector<32x256xf32>
    %c0_14 = arith.constant 0 : index
    %c0_15 = arith.constant 0 : index
    %c0_16 = arith.constant 0 : index
    %26 = vector.load %arg5[%c0_14, %c0_15, %c0_16] : memref<18x32x1xf32, #tpu.memory_space<vmem>>, vector<1x32x1xf32>
    %27 = vector.shape_cast %26 : vector<1x32x1xf32> to vector<32x1xf32>
    %28 = vector.broadcast %27 : vector<32x1xf32> to vector<32x256xf32>
    %29 = arith.mulf %25, %28 : vector<32x256xf32>
    %30 = arith.addf %19, %29 : vector<32x256xf32>
    %c16_i32 = arith.constant 16 : i32
    %31 = tpu.dynamic_rotate %15 by %c16_i32 dim 1 : vector<32x256xf32>, i32 -> vector<32x256xf32>
    %c1 = arith.constant 1 : index
    %c0_17 = arith.constant 0 : index
    %32 = vector.load %arg4[%c1, %c0_17] : memref<9x256xf32, #tpu.memory_space<vmem>>, vector<1x256xf32>
    %33 = vector.shape_cast %32 : vector<1x256xf32> to vector<256xf32>
    %34 = vector.shape_cast %33 : vector<256xf32> to vector<1x256xf32>
    %35 = vector.broadcast %34 : vector<1x256xf32> to vector<32x256xf32>
    %36 = arith.mulf %31, %35 : vector<32x256xf32>
    %c1_18 = arith.constant 1 : index
    %c0_19 = arith.constant 0 : index
    %c0_20 = arith.constant 0 : index
    %37 = vector.load %arg5[%c1_18, %c0_19, %c0_20] : memref<18x32x1xf32, #tpu.memory_space<vmem>>, vector<1x32x1xf32>
    %38 = vector.shape_cast %37 : vector<1x32x1xf32> to vector<32x1xf32>
    %39 = vector.broadcast %38 : vector<32x1xf32> to vector<32x256xf32>
    %40 = arith.mulf %36, %39 : vector<32x256xf32>
    %41 = arith.addf %30, %40 : vector<32x256xf32>
    %c15_i32 = arith.constant 15 : i32
    %42 = tpu.dynamic_rotate %15 by %c15_i32 dim 1 : vector<32x256xf32>, i32 -> vector<32x256xf32>
    %c2 = arith.constant 2 : index
    %c0_21 = arith.constant 0 : index
    %43 = vector.load %arg4[%c2, %c0_21] : memref<9x256xf32, #tpu.memory_space<vmem>>, vector<1x256xf32>
    %44 = vector.shape_cast %43 : vector<1x256xf32> to vector<256xf32>
    %45 = vector.shape_cast %44 : vector<256xf32> to vector<1x256xf32>
    %46 = vector.broadcast %45 : vector<1x256xf32> to vector<32x256xf32>
    %47 = arith.mulf %42, %46 : vector<32x256xf32>
    %c2_22 = arith.constant 2 : index
    %c0_23 = arith.constant 0 : index
    %c0_24 = arith.constant 0 : index
    %48 = vector.load %arg5[%c2_22, %c0_23, %c0_24] : memref<18x32x1xf32, #tpu.memory_space<vmem>>, vector<1x32x1xf32>
    %49 = vector.shape_cast %48 : vector<1x32x1xf32> to vector<32x1xf32>
    %50 = vector.broadcast %49 : vector<32x1xf32> to vector<32x256xf32>
    %51 = arith.mulf %47, %50 : vector<32x256xf32>
    %52 = arith.addf %41, %51 : vector<32x256xf32>
    %c1_i32 = arith.constant 1 : i32
    %53 = tpu.dynamic_rotate %15 by %c1_i32 dim 1 : vector<32x256xf32>, i32 -> vector<32x256xf32>
    %c3 = arith.constant 3 : index
    %c0_25 = arith.constant 0 : index
    %54 = vector.load %arg4[%c3, %c0_25] : memref<9x256xf32, #tpu.memory_space<vmem>>, vector<1x256xf32>
    %55 = vector.shape_cast %54 : vector<1x256xf32> to vector<256xf32>
    %56 = vector.shape_cast %55 : vector<256xf32> to vector<1x256xf32>
    %57 = vector.broadcast %56 : vector<1x256xf32> to vector<32x256xf32>
    %58 = arith.mulf %53, %57 : vector<32x256xf32>
    %c3_26 = arith.constant 3 : index
    %c0_27 = arith.constant 0 : index
    %c0_28 = arith.constant 0 : index
    %59 = vector.load %arg5[%c3_26, %c0_27, %c0_28] : memref<18x32x1xf32, #tpu.memory_space<vmem>>, vector<1x32x1xf32>
    %60 = vector.shape_cast %59 : vector<1x32x1xf32> to vector<32x1xf32>
    %61 = vector.broadcast %60 : vector<32x1xf32> to vector<32x256xf32>
    %62 = arith.mulf %58, %61 : vector<32x256xf32>
    %63 = arith.addf %52, %62 : vector<32x256xf32>
    %c255_i32 = arith.constant 255 : i32
    %64 = tpu.dynamic_rotate %15 by %c255_i32 dim 1 : vector<32x256xf32>, i32 -> vector<32x256xf32>
    %c5 = arith.constant 5 : index
    %c0_29 = arith.constant 0 : index
    %65 = vector.load %arg4[%c5, %c0_29] : memref<9x256xf32, #tpu.memory_space<vmem>>, vector<1x256xf32>
    %66 = vector.shape_cast %65 : vector<1x256xf32> to vector<256xf32>
    %67 = vector.shape_cast %66 : vector<256xf32> to vector<1x256xf32>
    %68 = vector.broadcast %67 : vector<1x256xf32> to vector<32x256xf32>
    %69 = arith.mulf %64, %68 : vector<32x256xf32>
    %c5_30 = arith.constant 5 : index
    %c0_31 = arith.constant 0 : index
    %c0_32 = arith.constant 0 : index
    %70 = vector.load %arg5[%c5_30, %c0_31, %c0_32] : memref<18x32x1xf32, #tpu.memory_space<vmem>>, vector<1x32x1xf32>
    %71 = vector.shape_cast %70 : vector<1x32x1xf32> to vector<32x1xf32>
    %72 = vector.broadcast %71 : vector<32x1xf32> to vector<32x256xf32>
    %73 = arith.mulf %69, %72 : vector<32x256xf32>
    %74 = arith.addf %63, %73 : vector<32x256xf32>
    %c241_i32 = arith.constant 241 : i32
    %75 = tpu.dynamic_rotate %15 by %c241_i32 dim 1 : vector<32x256xf32>, i32 -> vector<32x256xf32>
    %c6 = arith.constant 6 : index
    %c0_33 = arith.constant 0 : index
    %76 = vector.load %arg4[%c6, %c0_33] : memref<9x256xf32, #tpu.memory_space<vmem>>, vector<1x256xf32>
    %77 = vector.shape_cast %76 : vector<1x256xf32> to vector<256xf32>
    %78 = vector.shape_cast %77 : vector<256xf32> to vector<1x256xf32>
    %79 = vector.broadcast %78 : vector<1x256xf32> to vector<32x256xf32>
    %80 = arith.mulf %75, %79 : vector<32x256xf32>
    %c6_34 = arith.constant 6 : index
    %c0_35 = arith.constant 0 : index
    %c0_36 = arith.constant 0 : index
    %81 = vector.load %arg5[%c6_34, %c0_35, %c0_36] : memref<18x32x1xf32, #tpu.memory_space<vmem>>, vector<1x32x1xf32>
    %82 = vector.shape_cast %81 : vector<1x32x1xf32> to vector<32x1xf32>
    %83 = vector.broadcast %82 : vector<32x1xf32> to vector<32x256xf32>
    %84 = arith.mulf %80, %83 : vector<32x256xf32>
    %85 = arith.addf %74, %84 : vector<32x256xf32>
    %c240_i32 = arith.constant 240 : i32
    %86 = tpu.dynamic_rotate %15 by %c240_i32 dim 1 : vector<32x256xf32>, i32 -> vector<32x256xf32>
    %c7 = arith.constant 7 : index
    %c0_37 = arith.constant 0 : index
    %87 = vector.load %arg4[%c7, %c0_37] : memref<9x256xf32, #tpu.memory_space<vmem>>, vector<1x256xf32>
    %88 = vector.shape_cast %87 : vector<1x256xf32> to vector<256xf32>
    %89 = vector.shape_cast %88 : vector<256xf32> to vector<1x256xf32>
    %90 = vector.broadcast %89 : vector<1x256xf32> to vector<32x256xf32>
    %91 = arith.mulf %86, %90 : vector<32x256xf32>
    %c7_38 = arith.constant 7 : index
    %c0_39 = arith.constant 0 : index
    %c0_40 = arith.constant 0 : index
    %92 = vector.load %arg5[%c7_38, %c0_39, %c0_40] : memref<18x32x1xf32, #tpu.memory_space<vmem>>, vector<1x32x1xf32>
    %93 = vector.shape_cast %92 : vector<1x32x1xf32> to vector<32x1xf32>
    %94 = vector.broadcast %93 : vector<32x1xf32> to vector<32x256xf32>
    %95 = arith.mulf %91, %94 : vector<32x256xf32>
    %96 = arith.addf %85, %95 : vector<32x256xf32>
    %c239_i32 = arith.constant 239 : i32
    %97 = tpu.dynamic_rotate %15 by %c239_i32 dim 1 : vector<32x256xf32>, i32 -> vector<32x256xf32>
    %c8 = arith.constant 8 : index
    %c0_41 = arith.constant 0 : index
    %98 = vector.load %arg4[%c8, %c0_41] : memref<9x256xf32, #tpu.memory_space<vmem>>, vector<1x256xf32>
    %99 = vector.shape_cast %98 : vector<1x256xf32> to vector<256xf32>
    %100 = vector.shape_cast %99 : vector<256xf32> to vector<1x256xf32>
    %101 = vector.broadcast %100 : vector<1x256xf32> to vector<32x256xf32>
    %102 = arith.mulf %97, %101 : vector<32x256xf32>
    %c8_42 = arith.constant 8 : index
    %c0_43 = arith.constant 0 : index
    %c0_44 = arith.constant 0 : index
    %103 = vector.load %arg5[%c8_42, %c0_43, %c0_44] : memref<18x32x1xf32, #tpu.memory_space<vmem>>, vector<1x32x1xf32>
    %104 = vector.shape_cast %103 : vector<1x32x1xf32> to vector<32x1xf32>
    %105 = vector.broadcast %104 : vector<32x1xf32> to vector<32x256xf32>
    %106 = arith.mulf %102, %105 : vector<32x256xf32>
    %107 = arith.addf %96, %106 : vector<32x256xf32>
    %c0_45 = arith.constant 0 : index
    %c0_46 = arith.constant 0 : index
    %c0_47 = arith.constant 0 : index
    %108 = vector.load %arg6[%c0_45, %c0_46, %c0_47] : memref<2x32x1xf32, #tpu.memory_space<vmem>>, vector<1x32x1xf32>
    %109 = vector.shape_cast %108 : vector<1x32x1xf32> to vector<32x1xf32>
    %110 = vector.broadcast %109 : vector<32x1xf32> to vector<32x256xf32>
    %111 = arith.addf %107, %110 : vector<32x256xf32>
    %cst_48 = arith.constant 3.000000e+00 : f32
    %112 = vector.broadcast %cst_48 : f32 to vector<32x256xf32>
    %113 = arith.addf %111, %112 : vector<32x256xf32>
    %cst_49 = arith.constant 0.000000e+00 : f32
    %cst_50 = arith.constant 6.000000e+00 : f32
    %114 = vector.broadcast %cst_49 : f32 to vector<32x256xf32>
    %115 = arith.maximumf %114, %113 : vector<32x256xf32>
    %116 = vector.broadcast %cst_50 : f32 to vector<32x256xf32>
    %117 = arith.minimumf %116, %115 : vector<32x256xf32>
    %118 = arith.mulf %111, %117 : vector<32x256xf32>
    %cst_51 = arith.constant 0.166666672 : f32
    %119 = vector.broadcast %cst_51 : f32 to vector<32x256xf32>
    %120 = arith.mulf %118, %119 : vector<32x256xf32>
    %c0_52 = arith.constant 0 : index
    %c0_53 = arith.constant 0 : index
    %c0_54 = arith.constant 0 : index
    %121 = vector.load %arg7[%c0_52, %c0_53, %c0_54] : memref<2x32x32xf32, #tpu.memory_space<vmem>>, vector<1x32x32xf32>
    %122 = vector.shape_cast %121 : vector<1x32x32xf32> to vector<32x32xf32>
    %cst_55 = arith.constant dense<0.000000e+00> : vector<32x256xf32>
    %123 = tpu.matmul %122, %120, %cst_55 {dimension_numbers = #tpu.dot_dimension_numbers<[1], [0], [0], [1], [0, 0, 1, 1], [], []>} : vector<32x32xf32>, vector<32x256xf32>, vector<32x256xf32> -> vector<32x256xf32>
    %124 = arith.addf %15, %123 : vector<32x256xf32>
    %c0_56 = arith.constant 0 : index
    %c0_57 = arith.constant 0 : index
    %c0_58 = arith.constant 0 : index
    %125 = vector.load %arg8[%c0_56, %c0_57, %c0_58] : memref<2x32x1xf32, #tpu.memory_space<vmem>>, vector<1x32x1xf32>
    %126 = vector.shape_cast %125 : vector<1x32x1xf32> to vector<32x1xf32>
    %127 = vector.broadcast %126 : vector<32x1xf32> to vector<32x256xf32>
    %128 = arith.addf %124, %127 : vector<32x256xf32>
    %c13 = arith.constant 13 : index
    %c0_59 = arith.constant 0 : index
    %c0_60 = arith.constant 0 : index
    %129 = vector.load %arg5[%c13, %c0_59, %c0_60] : memref<18x32x1xf32, #tpu.memory_space<vmem>>, vector<1x32x1xf32>
    %130 = vector.shape_cast %129 : vector<1x32x1xf32> to vector<32x1xf32>
    %131 = vector.broadcast %130 : vector<32x1xf32> to vector<32x256xf32>
    %132 = arith.mulf %128, %131 : vector<32x256xf32>
    %c17_i32_61 = arith.constant 17 : i32
    %133 = tpu.dynamic_rotate %128 by %c17_i32_61 dim 1 : vector<32x256xf32>, i32 -> vector<32x256xf32>
    %c0_62 = arith.constant 0 : index
    %c0_63 = arith.constant 0 : index
    %134 = vector.load %arg4[%c0_62, %c0_63] : memref<9x256xf32, #tpu.memory_space<vmem>>, vector<1x256xf32>
    %135 = vector.shape_cast %134 : vector<1x256xf32> to vector<256xf32>
    %136 = vector.shape_cast %135 : vector<256xf32> to vector<1x256xf32>
    %137 = vector.broadcast %136 : vector<1x256xf32> to vector<32x256xf32>
    %138 = arith.mulf %133, %137 : vector<32x256xf32>
    %c9 = arith.constant 9 : index
    %c0_64 = arith.constant 0 : index
    %c0_65 = arith.constant 0 : index
    %139 = vector.load %arg5[%c9, %c0_64, %c0_65] : memref<18x32x1xf32, #tpu.memory_space<vmem>>, vector<1x32x1xf32>
    %140 = vector.shape_cast %139 : vector<1x32x1xf32> to vector<32x1xf32>
    %141 = vector.broadcast %140 : vector<32x1xf32> to vector<32x256xf32>
    %142 = arith.mulf %138, %141 : vector<32x256xf32>
    %143 = arith.addf %132, %142 : vector<32x256xf32>
    %c16_i32_66 = arith.constant 16 : i32
    %144 = tpu.dynamic_rotate %128 by %c16_i32_66 dim 1 : vector<32x256xf32>, i32 -> vector<32x256xf32>
    %c1_67 = arith.constant 1 : index
    %c0_68 = arith.constant 0 : index
    %145 = vector.load %arg4[%c1_67, %c0_68] : memref<9x256xf32, #tpu.memory_space<vmem>>, vector<1x256xf32>
    %146 = vector.shape_cast %145 : vector<1x256xf32> to vector<256xf32>
    %147 = vector.shape_cast %146 : vector<256xf32> to vector<1x256xf32>
    %148 = vector.broadcast %147 : vector<1x256xf32> to vector<32x256xf32>
    %149 = arith.mulf %144, %148 : vector<32x256xf32>
    %c10 = arith.constant 10 : index
    %c0_69 = arith.constant 0 : index
    %c0_70 = arith.constant 0 : index
    %150 = vector.load %arg5[%c10, %c0_69, %c0_70] : memref<18x32x1xf32, #tpu.memory_space<vmem>>, vector<1x32x1xf32>
    %151 = vector.shape_cast %150 : vector<1x32x1xf32> to vector<32x1xf32>
    %152 = vector.broadcast %151 : vector<32x1xf32> to vector<32x256xf32>
    %153 = arith.mulf %149, %152 : vector<32x256xf32>
    %154 = arith.addf %143, %153 : vector<32x256xf32>
    %c15_i32_71 = arith.constant 15 : i32
    %155 = tpu.dynamic_rotate %128 by %c15_i32_71 dim 1 : vector<32x256xf32>, i32 -> vector<32x256xf32>
    %c2_72 = arith.constant 2 : index
    %c0_73 = arith.constant 0 : index
    %156 = vector.load %arg4[%c2_72, %c0_73] : memref<9x256xf32, #tpu.memory_space<vmem>>, vector<1x256xf32>
    %157 = vector.shape_cast %156 : vector<1x256xf32> to vector<256xf32>
    %158 = vector.shape_cast %157 : vector<256xf32> to vector<1x256xf32>
    %159 = vector.broadcast %158 : vector<1x256xf32> to vector<32x256xf32>
    %160 = arith.mulf %155, %159 : vector<32x256xf32>
    %c11 = arith.constant 11 : index
    %c0_74 = arith.constant 0 : index
    %c0_75 = arith.constant 0 : index
    %161 = vector.load %arg5[%c11, %c0_74, %c0_75] : memref<18x32x1xf32, #tpu.memory_space<vmem>>, vector<1x32x1xf32>
    %162 = vector.shape_cast %161 : vector<1x32x1xf32> to vector<32x1xf32>
    %163 = vector.broadcast %162 : vector<32x1xf32> to vector<32x256xf32>
    %164 = arith.mulf %160, %163 : vector<32x256xf32>
    %165 = arith.addf %154, %164 : vector<32x256xf32>
    %c1_i32_76 = arith.constant 1 : i32
    %166 = tpu.dynamic_rotate %128 by %c1_i32_76 dim 1 : vector<32x256xf32>, i32 -> vector<32x256xf32>
    %c3_77 = arith.constant 3 : index
    %c0_78 = arith.constant 0 : index
    %167 = vector.load %arg4[%c3_77, %c0_78] : memref<9x256xf32, #tpu.memory_space<vmem>>, vector<1x256xf32>
    %168 = vector.shape_cast %167 : vector<1x256xf32> to vector<256xf32>
    %169 = vector.shape_cast %168 : vector<256xf32> to vector<1x256xf32>
    %170 = vector.broadcast %169 : vector<1x256xf32> to vector<32x256xf32>
    %171 = arith.mulf %166, %170 : vector<32x256xf32>
    %c12 = arith.constant 12 : index
    %c0_79 = arith.constant 0 : index
    %c0_80 = arith.constant 0 : index
    %172 = vector.load %arg5[%c12, %c0_79, %c0_80] : memref<18x32x1xf32, #tpu.memory_space<vmem>>, vector<1x32x1xf32>
    %173 = vector.shape_cast %172 : vector<1x32x1xf32> to vector<32x1xf32>
    %174 = vector.broadcast %173 : vector<32x1xf32> to vector<32x256xf32>
    %175 = arith.mulf %171, %174 : vector<32x256xf32>
    %176 = arith.addf %165, %175 : vector<32x256xf32>
    %c255_i32_81 = arith.constant 255 : i32
    %177 = tpu.dynamic_rotate %128 by %c255_i32_81 dim 1 : vector<32x256xf32>, i32 -> vector<32x256xf32>
    %c5_82 = arith.constant 5 : index
    %c0_83 = arith.constant 0 : index
    %178 = vector.load %arg4[%c5_82, %c0_83] : memref<9x256xf32, #tpu.memory_space<vmem>>, vector<1x256xf32>
    %179 = vector.shape_cast %178 : vector<1x256xf32> to vector<256xf32>
    %180 = vector.shape_cast %179 : vector<256xf32> to vector<1x256xf32>
    %181 = vector.broadcast %180 : vector<1x256xf32> to vector<32x256xf32>
    %182 = arith.mulf %177, %181 : vector<32x256xf32>
    %c14 = arith.constant 14 : index
    %c0_84 = arith.constant 0 : index
    %c0_85 = arith.constant 0 : index
    %183 = vector.load %arg5[%c14, %c0_84, %c0_85] : memref<18x32x1xf32, #tpu.memory_space<vmem>>, vector<1x32x1xf32>
    %184 = vector.shape_cast %183 : vector<1x32x1xf32> to vector<32x1xf32>
    %185 = vector.broadcast %184 : vector<32x1xf32> to vector<32x256xf32>
    %186 = arith.mulf %182, %185 : vector<32x256xf32>
    %187 = arith.addf %176, %186 : vector<32x256xf32>
    %c241_i32_86 = arith.constant 241 : i32
    %188 = tpu.dynamic_rotate %128 by %c241_i32_86 dim 1 : vector<32x256xf32>, i32 -> vector<32x256xf32>
    %c6_87 = arith.constant 6 : index
    %c0_88 = arith.constant 0 : index
    %189 = vector.load %arg4[%c6_87, %c0_88] : memref<9x256xf32, #tpu.memory_space<vmem>>, vector<1x256xf32>
    %190 = vector.shape_cast %189 : vector<1x256xf32> to vector<256xf32>
    %191 = vector.shape_cast %190 : vector<256xf32> to vector<1x256xf32>
    %192 = vector.broadcast %191 : vector<1x256xf32> to vector<32x256xf32>
    %193 = arith.mulf %188, %192 : vector<32x256xf32>
    %c15 = arith.constant 15 : index
    %c0_89 = arith.constant 0 : index
    %c0_90 = arith.constant 0 : index
    %194 = vector.load %arg5[%c15, %c0_89, %c0_90] : memref<18x32x1xf32, #tpu.memory_space<vmem>>, vector<1x32x1xf32>
    %195 = vector.shape_cast %194 : vector<1x32x1xf32> to vector<32x1xf32>
    %196 = vector.broadcast %195 : vector<32x1xf32> to vector<32x256xf32>
    %197 = arith.mulf %193, %196 : vector<32x256xf32>
    %198 = arith.addf %187, %197 : vector<32x256xf32>
    %c240_i32_91 = arith.constant 240 : i32
    %199 = tpu.dynamic_rotate %128 by %c240_i32_91 dim 1 : vector<32x256xf32>, i32 -> vector<32x256xf32>
    %c7_92 = arith.constant 7 : index
    %c0_93 = arith.constant 0 : index
    %200 = vector.load %arg4[%c7_92, %c0_93] : memref<9x256xf32, #tpu.memory_space<vmem>>, vector<1x256xf32>
    %201 = vector.shape_cast %200 : vector<1x256xf32> to vector<256xf32>
    %202 = vector.shape_cast %201 : vector<256xf32> to vector<1x256xf32>
    %203 = vector.broadcast %202 : vector<1x256xf32> to vector<32x256xf32>
    %204 = arith.mulf %199, %203 : vector<32x256xf32>
    %c16 = arith.constant 16 : index
    %c0_94 = arith.constant 0 : index
    %c0_95 = arith.constant 0 : index
    %205 = vector.load %arg5[%c16, %c0_94, %c0_95] : memref<18x32x1xf32, #tpu.memory_space<vmem>>, vector<1x32x1xf32>
    %206 = vector.shape_cast %205 : vector<1x32x1xf32> to vector<32x1xf32>
    %207 = vector.broadcast %206 : vector<32x1xf32> to vector<32x256xf32>
    %208 = arith.mulf %204, %207 : vector<32x256xf32>
    %209 = arith.addf %198, %208 : vector<32x256xf32>
    %c239_i32_96 = arith.constant 239 : i32
    %210 = tpu.dynamic_rotate %128 by %c239_i32_96 dim 1 : vector<32x256xf32>, i32 -> vector<32x256xf32>
    %c8_97 = arith.constant 8 : index
    %c0_98 = arith.constant 0 : index
    %211 = vector.load %arg4[%c8_97, %c0_98] : memref<9x256xf32, #tpu.memory_space<vmem>>, vector<1x256xf32>
    %212 = vector.shape_cast %211 : vector<1x256xf32> to vector<256xf32>
    %213 = vector.shape_cast %212 : vector<256xf32> to vector<1x256xf32>
    %214 = vector.broadcast %213 : vector<1x256xf32> to vector<32x256xf32>
    %215 = arith.mulf %210, %214 : vector<32x256xf32>
    %c17 = arith.constant 17 : index
    %c0_99 = arith.constant 0 : index
    %c0_100 = arith.constant 0 : index
    %216 = vector.load %arg5[%c17, %c0_99, %c0_100] : memref<18x32x1xf32, #tpu.memory_space<vmem>>, vector<1x32x1xf32>
    %217 = vector.shape_cast %216 : vector<1x32x1xf32> to vector<32x1xf32>
    %218 = vector.broadcast %217 : vector<32x1xf32> to vector<32x256xf32>
    %219 = arith.mulf %215, %218 : vector<32x256xf32>
    %220 = arith.addf %209, %219 : vector<32x256xf32>
    %c1_101 = arith.constant 1 : index
    %c0_102 = arith.constant 0 : index
    %c0_103 = arith.constant 0 : index
    %221 = vector.load %arg6[%c1_101, %c0_102, %c0_103] : memref<2x32x1xf32, #tpu.memory_space<vmem>>, vector<1x32x1xf32>
    %222 = vector.shape_cast %221 : vector<1x32x1xf32> to vector<32x1xf32>
    %223 = vector.broadcast %222 : vector<32x1xf32> to vector<32x256xf32>
    %224 = arith.addf %220, %223 : vector<32x256xf32>
    %cst_104 = arith.constant 3.000000e+00 : f32
    %225 = vector.broadcast %cst_104 : f32 to vector<32x256xf32>
    %226 = arith.addf %224, %225 : vector<32x256xf32>
    %cst_105 = arith.constant 0.000000e+00 : f32
    %cst_106 = arith.constant 6.000000e+00 : f32
    %227 = vector.broadcast %cst_105 : f32 to vector<32x256xf32>
    %228 = arith.maximumf %227, %226 : vector<32x256xf32>
    %229 = vector.broadcast %cst_106 : f32 to vector<32x256xf32>
    %230 = arith.minimumf %229, %228 : vector<32x256xf32>
    %231 = arith.mulf %224, %230 : vector<32x256xf32>
    %cst_107 = arith.constant 0.166666672 : f32
    %232 = vector.broadcast %cst_107 : f32 to vector<32x256xf32>
    %233 = arith.mulf %231, %232 : vector<32x256xf32>
    %c1_108 = arith.constant 1 : index
    %c0_109 = arith.constant 0 : index
    %c0_110 = arith.constant 0 : index
    %234 = vector.load %arg7[%c1_108, %c0_109, %c0_110] : memref<2x32x32xf32, #tpu.memory_space<vmem>>, vector<1x32x32xf32>
    %235 = vector.shape_cast %234 : vector<1x32x32xf32> to vector<32x32xf32>
    %cst_111 = arith.constant dense<0.000000e+00> : vector<32x256xf32>
    %236 = tpu.matmul %235, %233, %cst_111 {dimension_numbers = #tpu.dot_dimension_numbers<[1], [0], [0], [1], [0, 0, 1, 1], [], []>} : vector<32x32xf32>, vector<32x256xf32>, vector<32x256xf32> -> vector<32x256xf32>
    %237 = arith.addf %128, %236 : vector<32x256xf32>
    %c1_112 = arith.constant 1 : index
    %c0_113 = arith.constant 0 : index
    %c0_114 = arith.constant 0 : index
    %238 = vector.load %arg8[%c1_112, %c0_113, %c0_114] : memref<2x32x1xf32, #tpu.memory_space<vmem>>, vector<1x32x1xf32>
    %239 = vector.shape_cast %238 : vector<1x32x1xf32> to vector<32x1xf32>
    %240 = vector.broadcast %239 : vector<32x1xf32> to vector<32x256xf32>
    %241 = arith.addf %237, %240 : vector<32x256xf32>
    %c0_115 = arith.constant 0 : index
    %c0_116 = arith.constant 0 : index
    %c0_117 = arith.constant 0 : index
    %242 = vector.load %arg9[%c0_115, %c0_116, %c0_117] : memref<1x32x256xf32, #tpu.memory_space<vmem>>, vector<1x32x256xf32>
    %243 = vector.shape_cast %242 : vector<1x32x256xf32> to vector<32x256xf32>
    %244 = vector.shape_cast %241 : vector<32x256xf32> to vector<1x32x256xf32>
    tpu.vector_store %arg9[%c0_115, %c0_116, %c0_117], %244 {strides = array<i32>} : memref<1x32x256xf32, #tpu.memory_space<vmem>>, vector<1x32x256xf32>,
    return
  }
  func.func @transform_0(%arg0: i32) -> (i32, i32, i32) {
    %c0_i32 = arith.constant 0 : i32
    %c0_i32_0 = arith.constant 0 : i32
    %c0_i32_1 = arith.constant 0 : i32
    return %arg0, %c0_i32, %c0_i32_0 : i32, i32, i32
  }
  func.func @transform_1(%arg0: i32) -> (i32, i32) {
    %c0_i32 = arith.constant 0 : i32
    %c0_i32_0 = arith.constant 0 : i32
    %c0_i32_1 = arith.constant 0 : i32
    return %c0_i32, %c0_i32_0 : i32, i32
  }
  func.func @transform_2(%arg0: i32) -> (i32, i32) {
    %c0_i32 = arith.constant 0 : i32
    %c0_i32_0 = arith.constant 0 : i32
    %c0_i32_1 = arith.constant 0 : i32
    return %c0_i32, %c0_i32_0 : i32, i32
  }
  func.func @transform_3(%arg0: i32) -> (i32, i32) {
    %c0_i32 = arith.constant 0 : i32
    %c0_i32_0 = arith.constant 0 : i32
    %c0_i32_1 = arith.constant 0 : i32
    return %c0_i32, %c0_i32_0 : i32, i32
  }
  func.func @transform_4(%arg0: i32) -> (i32, i32, i32) {
    %c0_i32 = arith.constant 0 : i32
    %c0_i32_0 = arith.constant 0 : i32
    %c0_i32_1 = arith.constant 0 : i32
    %c0_i32_2 = arith.constant 0 : i32
    return %c0_i32, %c0_i32_0, %c0_i32_1 : i32, i32, i32
  }
  func.func @transform_5(%arg0: i32) -> (i32, i32, i32) {
    %c0_i32 = arith.constant 0 : i32
    %c0_i32_0 = arith.constant 0 : i32
    %c0_i32_1 = arith.constant 0 : i32
    %c0_i32_2 = arith.constant 0 : i32
    return %c0_i32, %c0_i32_0, %c0_i32_1 : i32, i32, i32
  }
  func.func @transform_6(%arg0: i32) -> (i32, i32, i32) {
    %c0_i32 = arith.constant 0 : i32
    %c0_i32_0 = arith.constant 0 : i32
    %c0_i32_1 = arith.constant 0 : i32
    %c0_i32_2 = arith.constant 0 : i32
    return %c0_i32, %c0_i32_0, %c0_i32_1 : i32, i32, i32
  }
  func.func @transform_7(%arg0: i32) -> (i32, i32, i32) {
    %c0_i32 = arith.constant 0 : i32
    %c0_i32_0 = arith.constant 0 : i32
    %c0_i32_1 = arith.constant 0 : i32
    %c0_i32_2 = arith.constant 0 : i32
    return %c0_i32, %c0_i32_0, %c0_i32_1 : i32, i32, i32
  }
  func.func @transform_8(%arg0: i32) -> (i32, i32, i32) {
    %c0_i32 = arith.constant 0 : i32
    %c0_i32_0 = arith.constant 0 : i32
    %c0_i32_1 = arith.constant 0 : i32
    return %arg0, %c0_i32, %c0_i32_0 : i32, i32, i32
  }
}

</mosaic_0001>

<llo_original>
// kernel: tpu_custom_call.1
$region0: #{tpu_custom_call.1}
  #allocation0 [shape = 'u32[]', space=smem, size = 0x4, offset = 0x4, fixed_abs, tag = 'smem constant byte address 0x4 - core index']
  #allocation1 [shape = 'u32[144,128]{1,0:T(1,128)}', space=vmem, size = 0x12000, scoped, tag = 'internal scratch']
  %s0 = inlined_call_operand.vmem [shape: f32[2,36,256], index: 0, kind: input, shape index: {}]
  %s1 = inlined_call_operand.vmem [shape: f32[32,36], index: 1, kind: input, shape index: {}]
  %s2 = inlined_call_operand.vmem [shape: f32[32,1], index: 2, kind: input, shape index: {}]
  %s3 = inlined_call_operand.vmem [shape: f32[9,256], index: 3, kind: input, shape index: {}]
  %s4 = inlined_call_operand.vmem [shape: f32[18,32,1], index: 4, kind: input, shape index: {}]
  %s5 = inlined_call_operand.vmem [shape: f32[2,32,1], index: 5, kind: input, shape index: {}]
  %s6 = inlined_call_operand.vmem [shape: f32[2,32,32], index: 6, kind: input, shape index: {}]
  %s7 = inlined_call_operand.vmem [shape: f32[2,32,1], index: 7, kind: input, shape index: {}]
  %s8 = inlined_call_operand.hbm [shape: f32[2,32,256], index: 8, kind: output, shape index: {}]
  %s9 = sld [smem:[#allocation0]]
  $region65: #{tpu_custom_call.1} parent=0
    _
  %s11 = ssub.s32 1, %s9
  %s12 = scalar_select 0, %s11, %s9
  $region1: #{tpu_custom_call.1} parent=0
    #allocation2 [shape = 'u8[65536]{0}', space=vmem, size = 0x10000, scoped, tag = 'output window, operand 0']
    #allocation3 [shape = 's32[2]{0}', space=sflag, size = 0x8, scoped, tag = 'scoped memory for tpu_custom_call.1']
    %13 = vsyncpa [#allocation3], 0
    %s14 = scalar_lea.sflag [#allocation3], 1
    %15 = vsyncpa %s14, 0
    loop: start=0, step=1, limit=4
    $region2: #{tpu_custom_call.1} parent=1 // loop_pre_header
      _
    $region3: #{tpu_custom_call.1} parent=1 // loop_header
      %s17 = sphi 0, %s21
      %p18 = scmp.ge.s32.totalorder %s17, 4
      %s27 = sphi 0, %s29
      %s30 = sphi 0, %s27
      %s31 = sphi 0, %s30
      %s47 = sphi 0, %s31
      %s51 = sphi 0, %s51
      %s53 = sphi 0, %s51
      %s54 = sphi 0, %s53
      %s68 = sphi 0, %s54
      %s72 = sphi 0, %s72
      %s74 = sphi 0, %s72
      %s75 = sphi 0, %s74
      %s89 = sphi 0, %s75
      %s93 = sphi 0, %s93
      %s95 = sphi 0, %s93
      %s96 = sphi 0, %s95
      %s110 = sphi 0, %s96
      %s114 = sphi 0, %s114
      %s116 = sphi 0, %s114
      %s117 = sphi 0, %s116
      %s131 = sphi 0, %s117
      %s135 = sphi 0, %s135
      %s137 = sphi 0, %s135
      %s138 = sphi 0, %s137
      %s152 = sphi 0, %s138
      %s156 = sphi 0, %s156
      %s158 = sphi 0, %s156
      %s159 = sphi 0, %s158
      %s173 = sphi 0, %s159
      %s177 = sphi 0, %s177
      %s179 = sphi 0, %s177
      %s180 = sphi 0, %s179
      %s194 = sphi 0, %s180
      %s200 = sphi 0, %s202
      %s203 = sphi 0, %s200
      %s204 = sphi 0, %s203
      %s220 = sphi 0, %s204
    $region4: #{tpu_custom_call.1} parent=1 // loop_header_branch
      %20 = sbr.rel (%p18) target = $region8
    $region5: #{tpu_custom_call.1} parent=1 // loop_body
      %s22 = ssub.s32 %s17, 1
      %s23 = ssub.s32 %s17, 2
      %s24 = sadd.s32 %s17, 1
      %s25 = ssub.s32 %s17, %s24
      %p26 = scmp.eq.s32.totalorder %s25, 0
      %s28 = sadd.s32 %s27, 1
      %s29 = scalar_select %p26, %s27, %s28
      %p32 = pneg %p26
      %p33 = scmp.eq.s32.totalorder %s17, 1
      %p34 = por %p32, %p33
      %p35 = scmp.ne.s32.totalorder %s27, %s30
      %p36 = scmp.eq.s32.totalorder %s17, 0
      %p37 = por %p35, %p36
      %p38 = scmp.ne.s32.totalorder %s27, %s30
      %p39 = scmp.eq.s32.totalorder %s22, 1
      %p40 = por %p38, %p39
      %p41 = scmp.ne.s32.totalorder %s30, %s31
      %p42 = scmp.eq.s32.totalorder %s22, 0
      %p43 = por %p41, %p42
      %p44 = scmp.ne.s32.totalorder %s30, %s31
      %p45 = scmp.eq.s32.totalorder %s23, 1
      %p46 = por %p44, %p45
      %p48 = scmp.ne.s32.totalorder %s31, %s47
      %p49 = scmp.eq.s32.totalorder %s23, 0
      %p50 = por %p48, %p49
      %s52 = sadd.s32 %s51, 1
      %p55 = scmp.eq.s32.totalorder %s17, 1
      %p56 = scmp.ne.s32.totalorder %s51, %s53
      %p57 = scmp.eq.s32.totalorder %s17, 0
      %p58 = por %p56, %p57
      %p59 = scmp.ne.s32.totalorder %s51, %s53
      %p60 = scmp.eq.s32.totalorder %s22, 1
      %p61 = por %p59, %p60
      %p62 = scmp.ne.s32.totalorder %s53, %s54
      %p63 = scmp.eq.s32.totalorder %s22, 0
      %p64 = por %p62, %p63
      %p65 = scmp.ne.s32.totalorder %s53, %s54
      %p66 = scmp.eq.s32.totalorder %s23, 1
      %p67 = por %p65, %p66
      %p69 = scmp.ne.s32.totalorder %s54, %s68
      %p70 = scmp.eq.s32.totalorder %s23, 0
      %p71 = por %p69, %p70
      %s73 = sadd.s32 %s72, 1
      %p76 = scmp.eq.s32.totalorder %s17, 1
      %p77 = scmp.ne.s32.totalorder %s72, %s74
      %p78 = scmp.eq.s32.totalorder %s17, 0
      %p79 = por %p77, %p78
      %p80 = scmp.ne.s32.totalorder %s72, %s74
      %p81 = scmp.eq.s32.totalorder %s22, 1
      %p82 = por %p80, %p81
      %p83 = scmp.ne.s32.totalorder %s74, %s75
      %p84 = scmp.eq.s32.totalorder %s22, 0
      %p85 = por %p83, %p84
      %p86 = scmp.ne.s32.totalorder %s74, %s75
      %p87 = scmp.eq.s32.totalorder %s23, 1
      %p88 = por %p86, %p87
      %p90 = scmp.ne.s32.totalorder %s75, %s89
      %p91 = scmp.eq.s32.totalorder %s23, 0
      %p92 = por %p90, %p91
      %s94 = sadd.s32 %s93, 1
      %p97 = scmp.eq.s32.totalorder %s17, 1
      %p98 = scmp.ne.s32.totalorder %s93, %s95
      %p99 = scmp.eq.s32.totalorder %s17, 0
      %p100 = por %p98, %p99
      %p101 = scmp.ne.s32.totalorder %s93, %s95
      %p102 = scmp.eq.s32.totalorder %s22, 1
      %p103 = por %p101, %p102
      %p104 = scmp.ne.s32.totalorder %s95, %s96
      %p105 = scmp.eq.s32.totalorder %s22, 0
      %p106 = por %p104, %p105
      %p107 = scmp.ne.s32.totalorder %s95, %s96
      %p108 = scmp.eq.s32.totalorder %s23, 1
      %p109 = por %p107, %p108
      %p111 = scmp.ne.s32.totalorder %s96, %s110
      %p112 = scmp.eq.s32.totalorder %s23, 0
      %p113 = por %p111, %p112
      %s115 = sadd.s32 %s114, 1
      %p118 = scmp.eq.s32.totalorder %s17, 1
      %p119 = scmp.ne.s32.totalorder %s114, %s116
      %p120 = scmp.eq.s32.totalorder %s17, 0
      %p121 = por %p119, %p120
      %p122 = scmp.ne.s32.totalorder %s114, %s116
      %p123 = scmp.eq.s32.totalorder %s22, 1
      %p124 = por %p122, %p123
      %p125 = scmp.ne.s32.totalorder %s116, %s117
      %p126 = scmp.eq.s32.totalorder %s22, 0
      %p127 = por %p125, %p126
      %p128 = scmp.ne.s32.totalorder %s116, %s117
      %p129 = scmp.eq.s32.totalorder %s23, 1
      %p130 = por %p128, %p129
      %p132 = scmp.ne.s32.totalorder %s117, %s131
      %p133 = scmp.eq.s32.totalorder %s23, 0
      %p134 = por %p132, %p133
      %s136 = sadd.s32 %s135, 1
      %p139 = scmp.eq.s32.totalorder %s17, 1
      %p140 = scmp.ne.s32.totalorder %s135, %s137
      %p141 = scmp.eq.s32.totalorder %s17, 0
      %p142 = por %p140, %p141
      %p143 = scmp.ne.s32.totalorder %s135, %s137
      %p144 = scmp.eq.s32.totalorder %s22, 1
      %p145 = por %p143, %p144
      %p146 = scmp.ne.s32.totalorder %s137, %s138
      %p147 = scmp.eq.s32.totalorder %s22, 0
      %p148 = por %p146, %p147
      %p149 = scmp.ne.s32.totalorder %s137, %s138
      %p150 = scmp.eq.s32.totalorder %s23, 1
      %p151 = por %p149, %p150
      %p153 = scmp.ne.s32.totalorder %s138, %s152
      %p154 = scmp.eq.s32.totalorder %s23, 0
      %p155 = por %p153, %p154
      %s157 = sadd.s32 %s156, 1
      %p160 = scmp.eq.s32.totalorder %s17, 1
      %p161 = scmp.ne.s32.totalorder %s156, %s158
      %p162 = scmp.eq.s32.totalorder %s17, 0
      %p163 = por %p161, %p162
      %p164 = scmp.ne.s32.totalorder %s156, %s158
      %p165 = scmp.eq.s32.totalorder %s22, 1
      %p166 = por %p164, %p165
      %p167 = scmp.ne.s32.totalorder %s158, %s159
      %p168 = scmp.eq.s32.totalorder %s22, 0
      %p169 = por %p167, %p168
      %p170 = scmp.ne.s32.totalorder %s158, %s159
      %p171 = scmp.eq.s32.totalorder %s23, 1
      %p172 = por %p170, %p171
      %p174 = scmp.ne.s32.totalorder %s159, %s173
      %p175 = scmp.eq.s32.totalorder %s23, 0
      %p176 = por %p174, %p175
      %s178 = sadd.s32 %s177, 1
      %p181 = scmp.eq.s32.totalorder %s17, 1
      %p182 = scmp.ne.s32.totalorder %s177, %s179
      %p183 = scmp.eq.s32.totalorder %s17, 0
      %p184 = por %p182, %p183
      %p185 = scmp.ne.s32.totalorder %s177, %s179
      %p186 = scmp.eq.s32.totalorder %s22, 1
      %p187 = por %p185, %p186
      %p188 = scmp.ne.s32.totalorder %s179, %s180
      %p189 = scmp.eq.s32.totalorder %s22, 0
      %p190 = por %p188, %p189
      %p191 = scmp.ne.s32.totalorder %s179, %s180
      %p192 = scmp.eq.s32.totalorder %s23, 1
      %p193 = por %p191, %p192
      %p195 = scmp.ne.s32.totalorder %s180, %s194
      %p196 = scmp.eq.s32.totalorder %s23, 0
      %p197 = por %p195, %p196
      %s198 = ssub.s32 %s17, %s24
      %p199 = scmp.eq.s32.totalorder %s198, 0
      %s201 = sadd.s32 %s200, 1
      %s202 = scalar_select %p199, %s200, %s201
      %p205 = pneg %p199
      %p206 = scmp.eq.s32.totalorder %s17, 1
      %p207 = por %p205, %p206
      %p208 = scmp.ne.s32.totalorder %s200, %s203
      %p209 = scmp.eq.s32.totalorder %s17, 0
      %p210 = por %p208, %p209
      %p211 = scmp.ne.s32.totalorder %s200, %s203
      %p212 = scmp.eq.s32.totalorder %s22, 1
      %p213 = por %p211, %p212
      %p214 = scmp.ne.s32.totalorder %s203, %s204
      %p215 = scmp.eq.s32.totalorder %s22, 0
      %p216 = por %p214, %p215
      %p217 = scmp.ne.s32.totalorder %s203, %s204
      %p218 = scmp.eq.s32.totalorder %s23, 1
      %p219 = por %p217, %p218
      %p221 = scmp.ne.s32.totalorder %s204, %s220
      %p222 = scmp.eq.s32.totalorder %s23, 0
      %p223 = por %p221, %p222
      %p224 = scmp.le.s32.totalorder 1, %s17
      %p225 = scmp.lt.s32.totalorder %s17, 3
      %p226 = pnand %p224, %p225
      %p227 = pneg %p226
      // Predicated region
      $region9: #{tpu_custom_call.1} parent=5 // pred_check
        _
      $region10: #{tpu_custom_call.1} parent=5 // pred_check_branch
        %229 = sbr.rel (%p226) target = $region12
      $region11: #{tpu_custom_call.1} parent=5 // pred_region
        %s230 = ssub.s32 %s17, 1
        // Predicated region
        $region13: #{tpu_custom_call.1} parent=11 // pred_check
          %p231 = pneg %p64
        $region14: #{tpu_custom_call.1} parent=11 // pred_check_branch
          %233 = sbr.rel (%p231) target = $region16
        $region15: #{tpu_custom_call.1} parent=11 // pred_region
          _
        $region16: #{tpu_custom_call.1} parent=11 // pred_fallthru
          _
        // Predicated region
        $region17: #{tpu_custom_call.1} parent=11 // pred_check
          %p234 = pneg %p85
        $region18: #{tpu_custom_call.1} parent=11 // pred_check_branch
          %236 = sbr.rel (%p234) target = $region20
        $region19: #{tpu_custom_call.1} parent=11 // pred_region
          _
        $region20: #{tpu_custom_call.1} parent=11 // pred_fallthru
          _
        // Predicated region
        $region21: #{tpu_custom_call.1} parent=11 // pred_check
          %p237 = pneg %p106
        $region22: #{tpu_custom_call.1} parent=11 // pred_check_branch
          %239 = sbr.rel (%p237) target = $region24
        $region23: #{tpu_custom_call.1} parent=11 // pred_region
          _
        $region24: #{tpu_custom_call.1} parent=11 // pred_fallthru
          _
        // Predicated region
        $region25: #{tpu_custom_call.1} parent=11 // pred_check
          %p240 = pneg %p127
        $region26: #{tpu_custom_call.1} parent=11 // pred_check_branch
          %242 = sbr.rel (%p240) target = $region28
        $region27: #{tpu_custom_call.1} parent=11 // pred_region
          _
        $region28: #{tpu_custom_call.1} parent=11 // pred_fallthru
          _
        // Predicated region
        $region29: #{tpu_custom_call.1} parent=11 // pred_check
          %p243 = pneg %p148
        $region30: #{tpu_custom_call.1} parent=11 // pred_check_branch
          %245 = sbr.rel (%p243) target = $region32
        $region31: #{tpu_custom_call.1} parent=11 // pred_region
          _
        $region32: #{tpu_custom_call.1} parent=11 // pred_fallthru
          _
        // Predicated region
        $region33: #{tpu_custom_call.1} parent=11 // pred_check
          %p246 = pneg %p169
        $region34: #{tpu_custom_call.1} parent=11 // pred_check_branch
          %248 = sbr.rel (%p246) target = $region36
        $region35: #{tpu_custom_call.1} parent=11 // pred_region
          _
        $region36: #{tpu_custom_call.1} parent=11 // pred_fallthru
          _
        // Predicated region
        $region37: #{tpu_custom_call.1} parent=11 // pred_check
          %p249 = pneg %p190
        $region38: #{tpu_custom_call.1} parent=11 // pred_check_branch
          %251 = sbr.rel (%p249) target = $region40
        $region39: #{tpu_custom_call.1} parent=11 // pred_region
          _
        $region40: #{tpu_custom_call.1} parent=11 // pred_fallthru
          _
      $region12: #{tpu_custom_call.1} parent=5 // pred_fallthru
        _
      %p252 = scmp.lt.s32.totalorder %s17, 2
      // Predicated region
      $region41: #{tpu_custom_call.1} parent=5 // pred_check
        %p253 = pneg %p252
      $region42: #{tpu_custom_call.1} parent=5 // pred_check_branch
        %255 = sbr.rel (%p253) target = $region44
      $region43: #{tpu_custom_call.1} parent=5 // pred_region
        // Predicated region
        $region45: #{tpu_custom_call.1} parent=43 // pred_check
          %p256 = pneg %p37
        $region46: #{tpu_custom_call.1} parent=43 // pred_check_branch
          %258 = sbr.rel (%p256) target = $region48
        $region47: #{tpu_custom_call.1} parent=43 // pred_region
          %p259 = scmp.lt.s32.totalorder %s17, 1
          %s260 = scalar_select %p259, %s17, 1
          %s261 = smul.addr %s260, 10
          %s262 = smul.addr %s261, 8
          %s263 = scalar_lea.vmem %s0, %s262
        $region48: #{tpu_custom_call.1} parent=43 // pred_fallthru
          _
      $region44: #{tpu_custom_call.1} parent=5 // pred_fallthru
        _
      %p264 = scmp.le.s32.totalorder 1, %s17
      %p265 = scmp.lt.s32.totalorder %s17, 3
      %p266 = pnand %p264, %p265
      %p267 = pneg %p266
      // Predicated region
      $region49: #{tpu_custom_call.1} parent=5 // pred_check
        _
      $region50: #{tpu_custom_call.1} parent=5 // pred_check_branch
        %269 = sbr.rel (%p266) target = $region52
      $region51: #{tpu_custom_call.1} parent=5 // pred_region
        %s270 = ssub.s32 %s17, 1
        %p271 = scmp.lt.s32.totalorder %s22, 1
        %s272 = scalar_select %p271, %s22, 1
        %s273 = smul.addr %s272, 10
        %s274 = smul.addr %s273, 8
        %s275 = scalar_lea.vmem %s0, %s274
        %p276 = pneg %p43
        %p277 = pneg %p40
        %p278 = pneg %p64
        %p279 = pneg %p61
        %p280 = pneg %p85
        %p281 = pneg %p82
        %p282 = pneg %p106
        %p283 = pneg %p103
        %p284 = pneg %p127
        %p285 = pneg %p124
        %p286 = pneg %p148
        %p287 = pneg %p145
        %p288 = pneg %p169
        %p289 = pneg %p166
        %p290 = pneg %p190
        %p291 = pneg %p187
        %p292 = pneg %p216
        %p293 = pneg %p213
        %s294 = sand.u32 %s203, 1
        %s295 = scalar_lea.sflag [#allocation3], %s294
        %s296 = sand.u32 %s203, 1
        %s297 = smul.addr %s296, 64
        %s298 = scalar_lea.vmem [#allocation2], %s297
        %p299 = scmp.lt.s32.totalorder %s22, 1
        %s300 = scalar_select %p299, %s22, 1
        %s301 = smul.addr %s300, 10
        %s302 = smul.addr %s301, 8
        %s303 = scalar_lea.vmem %s0, %s302
        %v304 = vld [vmem:[%s1] sm:$0xff]
        %v305 = vld [vmem:[%s1 + $0x8] sm:$0xff]
        %v306 = vld [vmem:[%s1 + $0x10] sm:$0xff]
        %v307 = vld [vmem:[%s1 + $0x18] sm:$0xff]
        %v308 = vld [vmem:[%s303] sm:$0xff]
        %v309 = vld [vmem:[%s303 + $0x8] sm:$0xff]
        %v310 = vld [vmem:[%s303 + $0x10] sm:$0xff]
        %v311 = vld [vmem:[%s303 + $0x18] sm:$0xff]
        %v312 = vld [vmem:[%s303 + $0x20] sm:$0xff]
        %v313 = vld [vmem:[%s303 + $0x28] sm:$0xff]
        %v314 = vld [vmem:[%s303 + $0x30] sm:$0xff]
        %v315 = vld [vmem:[%s303 + $0x38] sm:$0xff]
        %v316 = vld [vmem:[%s303 + $0x40] sm:$0xf]
        %v317 = vld [vmem:[%s303 + $0x48] sm:$0xf]
        %v318 = vld [vmem:[%s2] sm:$0xff]
        %v319 = vld [vmem:[%s2 + $0x8] sm:$0xff]
        %v320 = vld [vmem:[%s2 + $0x10] sm:$0xff]
        %v321 = vld [vmem:[%s2 + $0x18] sm:$0xff]
        %323 = vset.pattern.permute.xlu0 0
        %324 = vperm.xlu0 %323, %v318
        %v325 = vpop.permute.xlu0 %324
        %328 = vset.pattern.permute.xlu0 0
        %329 = vperm.xlu0 %328, %v319
        %v330 = vpop.permute.xlu0 %329
        %333 = vset.pattern.permute.xlu0 0
        %334 = vperm.xlu0 %333, %v320
        %v335 = vpop.permute.xlu0 %334
        %338 = vset.pattern.permute.xlu0 0
        %339 = vperm.xlu0 %338, %v321
        %v340 = vpop.permute.xlu0 %339
        %vm342 = vcmask 293888
        %v344 = vsel %vm342, %v304, 0
        %v347 = vsel %vm342, %v305, 0
        %v350 = vsel %vm342, %v306, 0
        %v353 = vsel %vm342, %v307, 0
        %vm355 = vcmask 1043456
        %v357 = vsel %vm355, %v316, 0
        %v360 = vsel %vm355, %v317, 0
        %362 = vmatprep.subr.mxu0 %v309
        %363 = vmatpush1.msra.mxu0 %v308
        %364 = vmatprep.subr.mxu0 %v311
        %365 = vmatpush1.msra.mxu0 %v310
        %366 = vmatprep.subr.mxu0 %v313
        %367 = vmatpush1.msra.mxu0 %v312
        %368 = vmatprep.subr.mxu0 %v315
        %369 = vmatpush1.msra.mxu0 %v314
        %370 = vmatprep.subr.mxu0 %v360
        %371 = vmatpush1.msra.mxu0 %v357
        %372 = vmatprep.subr.mxu0 0.0
        %373 = vmatpush1.msra.mxu0 0.0
        %374 = vmatprep.subr.mxu0 0.0
        %375 = vmatpush1.msra.mxu0 0.0
        %376 = vmatprep.subr.mxu0 0.0
        %377 = vmatpush1.msra.mxu0 0.0
        %378 = vmatprep.subr.mxu0 0.0
        %379 = vmatpush1.msra.mxu0 0.0
        %380 = vmatprep.subr.mxu0 0.0
        %381 = vmatpush1.msra.mxu0 0.0
        %382 = vmatprep.subr.mxu0 0.0
        %383 = vmatpush1.msra.mxu0 0.0
        %384 = vmatprep.subr.mxu0 0.0
        %385 = vmatpush1.msra.mxu0 0.0
        %386 = vmatprep.subr.mxu0 0.0
        %387 = vmatpush1.msra.mxu0 0.0
        %388 = vmatprep.subr.mxu0 0.0
        %389 = vmatpush1.msra.mxu0 0.0
        %390 = vmatprep.subr.mxu0 0.0
        %391 = vmatpush1.msra.mxu0 0.0
        %392 = vmatprep.subr.mxu0 0.0
        %393 = vmatpush1.msra.mxu0 0.0
        %394 = vmatprep.subr.mxu0 0.0
        %395 = vmatpush1.msra.mxu0 0.0
        %396 = vmatprep.subr.mxu0 0.0
        %397 = vmatpush1.msra.mxu0 0.0
        %398 = vmatprep.subr.mxu0 0.0
        %399 = vmatpush1.msra.mxu0 0.0
        %400 = vmatprep.subr.mxu0 0.0
        %401 = vmatpush1.msra.mxu0 0.0
        %402 = vmatprep.subr.mxu0 0.0
        %403 = vmatpush1.msra.mxu0 0.0
        %404 = vmatprep.subr.mxu0 0.0
        %405 = vmatpush1.msra.mxu0 0.0
        %406 = vmatprep.subr.mxu0 0.0
        %407 = vmatpush1.msra.mxu0 0.0
        %408 = vmatprep.subr.mxu0 0.0
        %409 = vmatpush1.msra.mxu0 0.0
        %410 = vmatprep.subr.mxu0 0.0
        %411 = vmatpush1.msra.mxu0 0.0
        %412 = vmatprep.subr.mxu0 0.0
        %413 = vmatpush1.msra.mxu0 0.0
        %414 = vmatprep.subr.mxu0 0.0
        %415 = vmatpush1.msra.mxu0 0.0
        %416 = vmatprep.subr.mxu0 0.0
        %417 = vmatpush1.msra.mxu0 0.0
        %418 = vmatprep.subr.mxu0 0.0
        %419 = vmatpush1.msra.mxu0 0.0
        %420 = vmatprep.subr.mxu0 0.0
        %421 = vmatpush1.msra.mxu0 0.0
        %422 = vmatprep.subr.mxu0 0.0
        %423 = vmatpush1.msra.mxu0 0.0
        %424 = vmatprep.subr.mxu0 0.0
        %425 = vmatpush1.msra.mxu0 0.0
        %426 = vmatprep.mubr.f32.mxu0 0.0
        %427 = vmatmul.mubr.f32.gmra.mrb[0].mxu0 %v344
        %v428 = vpop.f32.mrb[0].mxu0
        %v429 = vadd.f32 %v325, %v428
        %v430 = vpop.f32.mrb[0].mxu0
        %v431 = vadd.f32 %v325, %v430
        %432 = vmatprep.mubr.f32.mxu0 0.0
        %433 = vmatmul.mubr.f32.gmra.mrb[0].mxu0 %v347
        %v434 = vpop.f32.mrb[0].mxu0
        %v435 = vadd.f32 %v330, %v434
        %v436 = vpop.f32.mrb[0].mxu0
        %v437 = vadd.f32 %v330, %v436
        %438 = vmatprep.mubr.f32.mxu0 0.0
        %439 = vmatmul.mubr.f32.gmra.mrb[0].mxu0 %v350
        %v440 = vpop.f32.mrb[0].mxu0
        %v441 = vadd.f32 %v335, %v440
        %v442 = vpop.f32.mrb[0].mxu0
        %v443 = vadd.f32 %v335, %v442
        %444 = vmatprep.mubr.f32.mxu0 0.0
        %445 = vmatmul.mubr.f32.gmra.mrb[0].mxu0 %v353
        %v446 = vpop.f32.mrb[0].mxu0
        %v447 = vadd.f32 %v340, %v446
        %v448 = vpop.f32.mrb[0].mxu0
        %v449 = vadd.f32 %v340, %v448
        %450 = vdwg.mxu0
        %v451 = vadd.f32 %v429, 3.0
        %v452 = vadd.f32 %v431, 3.0
        %v453 = vadd.f32 %v435, 3.0
        %v454 = vadd.f32 %v437, 3.0
        %v455 = vadd.f32 %v441, 3.0
        %v456 = vadd.f32 %v443, 3.0
        %v457 = vadd.f32 %v447, 3.0
        %v458 = vadd.f32 %v449, 3.0
        %v459 = vmax.f32 %v451, 0.0
        %v460 = vmax.f32 %v452, 0.0
        %v461 = vmax.f32 %v453, 0.0
        %v462 = vmax.f32 %v454, 0.0
        %v463 = vmax.f32 %v455, 0.0
        %v464 = vmax.f32 %v456, 0.0
        %v465 = vmax.f32 %v457, 0.0
        %v466 = vmax.f32 %v458, 0.0
        %v467 = vmin.f32 %v459, 6.0
        %v468 = vmin.f32 %v460, 6.0
        %v469 = vmin.f32 %v461, 6.0
        %v470 = vmin.f32 %v462, 6.0
        %v471 = vmin.f32 %v463, 6.0
        %v472 = vmin.f32 %v464, 6.0
        %v473 = vmin.f32 %v465, 6.0
        %v474 = vmin.f32 %v466, 6.0
        %v475 = vmul.f32 %v429, %v467
        %v476 = vmul.f32 %v431, %v468
        %v477 = vmul.f32 %v435, %v469
        %v478 = vmul.f32 %v437, %v470
        %v479 = vmul.f32 %v441, %v471
        %v480 = vmul.f32 %v443, %v472
        %v481 = vmul.f32 %v447, %v473
        %v482 = vmul.f32 %v449, %v474
        %v483 = vmul.f32 %v475, 0.16666667
        %v484 = vmul.f32 %v476, 0.16666667
        %v485 = vmul.f32 %v477, 0.16666667
        %v486 = vmul.f32 %v478, 0.16666667
        %v487 = vmul.f32 %v479, 0.16666667
        %v488 = vmul.f32 %v480, 0.16666667
        %v489 = vmul.f32 %v481, 0.16666667
        %v490 = vmul.f32 %v482, 0.16666667
        %s491 = scalar_lea.vmem %s4, 128
        %v492 = vld [vmem:[%s491] sm:$0xff]
        %v493 = vld [vmem:[%s491 + $0x8] sm:$0xff]
        %v494 = vld [vmem:[%s491 + $0x10] sm:$0xff]
        %v495 = vld [vmem:[%s491 + $0x18] sm:$0xff]
        %497 = vset.pattern.permute.xlu0 0
        %498 = vperm.xlu0 %497, %v492
        %v499 = vpop.permute.xlu0 %498
        %502 = vset.pattern.permute.xlu0 0
        %503 = vperm.xlu0 %502, %v493
        %v504 = vpop.permute.xlu0 %503
        %507 = vset.pattern.permute.xlu0 0
        %508 = vperm.xlu0 %507, %v494
        %v509 = vpop.permute.xlu0 %508
        %512 = vset.pattern.permute.xlu0 0
        %513 = vperm.xlu0 %512, %v495
        %v514 = vpop.permute.xlu0 %513
        %v516 = vmul.f32 %v483, %v499
        %v517 = vmul.f32 %v484, %v499
        %v518 = vmul.f32 %v485, %v504
        %v519 = vmul.f32 %v486, %v504
        %v520 = vmul.f32 %v487, %v509
        %v521 = vmul.f32 %v488, %v509
        %v522 = vmul.f32 %v489, %v514
        %v523 = vmul.f32 %v490, %v514
        %524 = vrot.lane.b32.xlu0 %v483, 17
        %v525 = vpop.permute.xlu0 %524
        %526 = vrot.lane.b32.xlu0 %v485, 17
        %v527 = vpop.permute.xlu0 %526
        %528 = vrot.lane.b32.xlu0 %v487, 17
        %v529 = vpop.permute.xlu0 %528
        %530 = vrot.lane.b32.xlu0 %v489, 17
        %v531 = vpop.permute.xlu0 %530
        %532 = vrot.lane.b32.xlu0 %v484, 17
        %v533 = vpop.permute.xlu0 %532
        %534 = vrot.lane.b32.xlu0 %v486, 17
        %v535 = vpop.permute.xlu0 %534
        %536 = vrot.lane.b32.xlu0 %v488, 17
        %v537 = vpop.permute.xlu0 %536
        %538 = vrot.lane.b32.xlu0 %v490, 17
        %v539 = vpop.permute.xlu0 %538
        %v540 = vlaneseq
        %v541 = vand.u32 %v540, 127
        %vm542 = vcmp.lt.s32.totalorder %v541, 17
        %v543 = vsel %vm542, %v525, %v533
        %v544 = vsel %vm542, %v527, %v535
        %v545 = vsel %vm542, %v529, %v537
        %v546 = vsel %vm542, %v531, %v539
        %v547 = vsel %vm542, %v533, %v525
        %v548 = vsel %vm542, %v535, %v527
        %v549 = vsel %vm542, %v537, %v529
        %v550 = vsel %vm542, %v539, %v531
        %v551 = vld [vmem:[%s3] ss:$8 sm:$0x3]
        %v553 = vlaneseq
        %v554 = vshrl.u32 %v553, 7
        %v555 = vsub.s32 0, %v554
        %v556 = vrot.slane %v551, %v555
        %v557 = vlaneseq
        %v558 = vshrl.u32 %v557, 7
        %v559 = vsub.s32 1, %v558
        %v560 = vrot.slane %v551, %v559
        %v563 = vmul.f32 %v547, %v556
        %v564 = vmul.f32 %v543, %v560
        %v565 = vmul.f32 %v548, %v556
        %v566 = vmul.f32 %v544, %v560
        %v567 = vmul.f32 %v549, %v556
        %v568 = vmul.f32 %v545, %v560
        %v569 = vmul.f32 %v550, %v556
        %v570 = vmul.f32 %v546, %v560
        %v571 = vld [vmem:[%s4] sm:$0xff]
        %v572 = vld [vmem:[%s4 + $0x8] sm:$0xff]
        %v573 = vld [vmem:[%s4 + $0x10] sm:$0xff]
        %v574 = vld [vmem:[%s4 + $0x18] sm:$0xff]
        %576 = vset.pattern.permute.xlu0 0
        %577 = vperm.xlu0 %576, %v571
        %v578 = vpop.permute.xlu0 %577
        %581 = vset.pattern.permute.xlu0 0
        %582 = vperm.xlu0 %581, %v572
        %v583 = vpop.permute.xlu0 %582
        %586 = vset.pattern.permute.xlu0 0
        %587 = vperm.xlu0 %586, %v573
        %v588 = vpop.permute.xlu0 %587
        %591 = vset.pattern.permute.xlu0 0
        %592 = vperm.xlu0 %591, %v574
        %v593 = vpop.permute.xlu0 %592
        %v595 = vmul.f32 %v563, %v578
        %v596 = vmul.f32 %v564, %v578
        %v597 = vmul.f32 %v565, %v583
        %v598 = vmul.f32 %v566, %v583
        %v599 = vmul.f32 %v567, %v588
        %v600 = vmul.f32 %v568, %v588
        %v601 = vmul.f32 %v569, %v593
        %v602 = vmul.f32 %v570, %v593
        %v603 = vadd.f32 %v516, %v595
        %v604 = vadd.f32 %v517, %v596
        %v605 = vadd.f32 %v518, %v597
        %v606 = vadd.f32 %v519, %v598
        %v607 = vadd.f32 %v520, %v599
        %v608 = vadd.f32 %v521, %v600
        %v609 = vadd.f32 %v522, %v601
        %v610 = vadd.f32 %v523, %v602
        %611 = vrot.lane.b32.xlu0 %v483, 16
        %v612 = vpop.permute.xlu0 %611
        %613 = vrot.lane.b32.xlu0 %v485, 16
        %v614 = vpop.permute.xlu0 %613
        %615 = vrot.lane.b32.xlu0 %v487, 16
        %v616 = vpop.permute.xlu0 %615
        %617 = vrot.lane.b32.xlu0 %v489, 16
        %v618 = vpop.permute.xlu0 %617
        %619 = vrot.lane.b32.xlu0 %v484, 16
        %v620 = vpop.permute.xlu0 %619
        %621 = vrot.lane.b32.xlu0 %v486, 16
        %v622 = vpop.permute.xlu0 %621
        %623 = vrot.lane.b32.xlu0 %v488, 16
        %v624 = vpop.permute.xlu0 %623
        %625 = vrot.lane.b32.xlu0 %v490, 16
        %v626 = vpop.permute.xlu0 %625
        %vm627 = vcmp.lt.s32.totalorder %v541, 16
        %v628 = vsel %vm627, %v612, %v620
        %v629 = vsel %vm627, %v614, %v622
        %v630 = vsel %vm627, %v616, %v624
        %v631 = vsel %vm627, %v618, %v626
        %v632 = vsel %vm627, %v620, %v612
        %v633 = vsel %vm627, %v622, %v614
        %v634 = vsel %vm627, %v624, %v616
        %v635 = vsel %vm627, %v626, %v618
        %s636 = scalar_lea.vmem %s3, 1
        %v637 = vld [vmem:[%s636] ss:$8 sm:$0x3]
        %v639 = vlaneseq
        %v640 = vshrl.u32 %v639, 7
        %v641 = vsub.s32 0, %v640
        %v642 = vrot.slane %v637, %v641
        %v643 = vlaneseq
        %v644 = vshrl.u32 %v643, 7
        %v645 = vsub.s32 1, %v644
        %v646 = vrot.slane %v637, %v645
        %v649 = vmul.f32 %v632, %v642
        %v650 = vmul.f32 %v628, %v646
        %v651 = vmul.f32 %v633, %v642
        %v652 = vmul.f32 %v629, %v646
        %v653 = vmul.f32 %v634, %v642
        %v654 = vmul.f32 %v630, %v646
        %v655 = vmul.f32 %v635, %v642
        %v656 = vmul.f32 %v631, %v646
        %s657 = scalar_lea.vmem %s4, 32
        %v658 = vld [vmem:[%s657] sm:$0xff]
        %v659 = vld [vmem:[%s657 + $0x8] sm:$0xff]
        %v660 = vld [vmem:[%s657 + $0x10] sm:$0xff]
        %v661 = vld [vmem:[%s657 + $0x18] sm:$0xff]
        %663 = vset.pattern.permute.xlu0 0
        %664 = vperm.xlu0 %663, %v658
        %v665 = vpop.permute.xlu0 %664
        %668 = vset.pattern.permute.xlu0 0
        %669 = vperm.xlu0 %668, %v659
        %v670 = vpop.permute.xlu0 %669
        %673 = vset.pattern.permute.xlu0 0
        %674 = vperm.xlu0 %673, %v660
        %v675 = vpop.permute.xlu0 %674
        %678 = vset.pattern.permute.xlu0 0
        %679 = vperm.xlu0 %678, %v661
        %v680 = vpop.permute.xlu0 %679
        %v682 = vmul.f32 %v649, %v665
        %v683 = vmul.f32 %v650, %v665
        %v684 = vmul.f32 %v651, %v670
        %v685 = vmul.f32 %v652, %v670
        %v686 = vmul.f32 %v653, %v675
        %v687 = vmul.f32 %v654, %v675
        %v688 = vmul.f32 %v655, %v680
        %v689 = vmul.f32 %v656, %v680
        %v690 = vadd.f32 %v603, %v682
        %v691 = vadd.f32 %v604, %v683
        %v692 = vadd.f32 %v605, %v684
        %v693 = vadd.f32 %v606, %v685
        %v694 = vadd.f32 %v607, %v686
        %v695 = vadd.f32 %v608, %v687
        %v696 = vadd.f32 %v609, %v688
        %v697 = vadd.f32 %v610, %v689
        %698 = vrot.lane.b32.xlu0 %v483, 15
        %v699 = vpop.permute.xlu0 %698
        %700 = vrot.lane.b32.xlu0 %v485, 15
        %v701 = vpop.permute.xlu0 %700
        %702 = vrot.lane.b32.xlu0 %v487, 15
        %v703 = vpop.permute.xlu0 %702
        %704 = vrot.lane.b32.xlu0 %v489, 15
        %v705 = vpop.permute.xlu0 %704
        %706 = vrot.lane.b32.xlu0 %v484, 15
        %v707 = vpop.permute.xlu0 %706
        %708 = vrot.lane.b32.xlu0 %v486, 15
        %v709 = vpop.permute.xlu0 %708
        %710 = vrot.lane.b32.xlu0 %v488, 15
        %v711 = vpop.permute.xlu0 %710
        %712 = vrot.lane.b32.xlu0 %v490, 15
        %v713 = vpop.permute.xlu0 %712
        %vm714 = vcmp.lt.s32.totalorder %v541, 15
        %v715 = vsel %vm714, %v699, %v707
        %v716 = vsel %vm714, %v701, %v709
        %v717 = vsel %vm714, %v703, %v711
        %v718 = vsel %vm714, %v705, %v713
        %v719 = vsel %vm714, %v707, %v699
        %v720 = vsel %vm714, %v709, %v701
        %v721 = vsel %vm714, %v711, %v703
        %v722 = vsel %vm714, %v713, %v705
        %s723 = scalar_lea.vmem %s3, 2
        %v724 = vld [vmem:[%s723] ss:$8 sm:$0x3]
        %v726 = vlaneseq
        %v727 = vshrl.u32 %v726, 7
        %v728 = vsub.s32 0, %v727
        %v729 = vrot.slane %v724, %v728
        %v730 = vlaneseq
        %v731 = vshrl.u32 %v730, 7
        %v732 = vsub.s32 1, %v731
        %v733 = vrot.slane %v724, %v732
        %v736 = vmul.f32 %v719, %v729
        %v737 = vmul.f32 %v715, %v733
        %v738 = vmul.f32 %v720, %v729
        %v739 = vmul.f32 %v716, %v733
        %v740 = vmul.f32 %v721, %v729
        %v741 = vmul.f32 %v717, %v733
        %v742 = vmul.f32 %v722, %v729
        %v743 = vmul.f32 %v718, %v733
        %s744 = scalar_lea.vmem %s4, 64
        %v745 = vld [vmem:[%s744] sm:$0xff]
        %v746 = vld [vmem:[%s744 + $0x8] sm:$0xff]
        %v747 = vld [vmem:[%s744 + $0x10] sm:$0xff]
        %v748 = vld [vmem:[%s744 + $0x18] sm:$0xff]
        %750 = vset.pattern.permute.xlu0 0
        %751 = vperm.xlu0 %750, %v745
        %v752 = vpop.permute.xlu0 %751
        %755 = vset.pattern.permute.xlu0 0
        %756 = vperm.xlu0 %755, %v746
        %v757 = vpop.permute.xlu0 %756
        %760 = vset.pattern.permute.xlu0 0
        %761 = vperm.xlu0 %760, %v747
        %v762 = vpop.permute.xlu0 %761
        %765 = vset.pattern.permute.xlu0 0
        %766 = vperm.xlu0 %765, %v748
        %v767 = vpop.permute.xlu0 %766
        %v769 = vmul.f32 %v736, %v752
        %v770 = vmul.f32 %v737, %v752
        %v771 = vmul.f32 %v738, %v757
        %v772 = vmul.f32 %v739, %v757
        %v773 = vmul.f32 %v740, %v762
        %v774 = vmul.f32 %v741, %v762
        %v775 = vmul.f32 %v742, %v767
        %v776 = vmul.f32 %v743, %v767
        %v777 = vadd.f32 %v690, %v769
        %v778 = vadd.f32 %v691, %v770
        %v779 = vadd.f32 %v692, %v771
        %v780 = vadd.f32 %v693, %v772
        %v781 = vadd.f32 %v694, %v773
        %v782 = vadd.f32 %v695, %v774
        %v783 = vadd.f32 %v696, %v775
        %v784 = vadd.f32 %v697, %v776
        %785 = vrot.lane.b32.xlu0 %v483, 1
        %v786 = vpop.permute.xlu0 %785
        %787 = vrot.lane.b32.xlu0 %v485, 1
        %v788 = vpop.permute.xlu0 %787
        %789 = vrot.lane.b32.xlu0 %v487, 1
        %v790 = vpop.permute.xlu0 %789
        %791 = vrot.lane.b32.xlu0 %v489, 1
        %v792 = vpop.permute.xlu0 %791
        %793 = vrot.lane.b32.xlu0 %v484, 1
        %v794 = vpop.permute.xlu0 %793
        %795 = vrot.lane.b32.xlu0 %v486, 1
        %v796 = vpop.permute.xlu0 %795
        %797 = vrot.lane.b32.xlu0 %v488, 1
        %v798 = vpop.permute.xlu0 %797
        %799 = vrot.lane.b32.xlu0 %v490, 1
        %v800 = vpop.permute.xlu0 %799
        %vm801 = vcmp.lt.s32.totalorder %v541, 1
        %v802 = vsel %vm801, %v786, %v794
        %v803 = vsel %vm801, %v788, %v796
        %v804 = vsel %vm801, %v790, %v798
        %v805 = vsel %vm801, %v792, %v800
        %v806 = vsel %vm801, %v794, %v786
        %v807 = vsel %vm801, %v796, %v788
        %v808 = vsel %vm801, %v798, %v790
        %v809 = vsel %vm801, %v800, %v792
        %s810 = scalar_lea.vmem %s3, 3
        %v811 = vld [vmem:[%s810] ss:$8 sm:$0x3]
        %v813 = vlaneseq
        %v814 = vshrl.u32 %v813, 7
        %v815 = vsub.s32 0, %v814
        %v816 = vrot.slane %v811, %v815
        %v817 = vlaneseq
        %v818 = vshrl.u32 %v817, 7
        %v819 = vsub.s32 1, %v818
        %v820 = vrot.slane %v811, %v819
        %v823 = vmul.f32 %v806, %v816
        %v824 = vmul.f32 %v802, %v820
        %v825 = vmul.f32 %v807, %v816
        %v826 = vmul.f32 %v803, %v820
        %v827 = vmul.f32 %v808, %v816
        %v828 = vmul.f32 %v804, %v820
        %v829 = vmul.f32 %v809, %v816
        %v830 = vmul.f32 %v805, %v820
        %s831 = scalar_lea.vmem %s4, 96
        %v832 = vld [vmem:[%s831] sm:$0xff]
        %v833 = vld [vmem:[%s831 + $0x8] sm:$0xff]
        %v834 = vld [vmem:[%s831 + $0x10] sm:$0xff]
        %v835 = vld [vmem:[%s831 + $0x18] sm:$0xff]
        %837 = vset.pattern.permute.xlu0 0
        %838 = vperm.xlu0 %837, %v832
        %v839 = vpop.permute.xlu0 %838
        %842 = vset.pattern.permute.xlu0 0
        %843 = vperm.xlu0 %842, %v833
        %v844 = vpop.permute.xlu0 %843
        %847 = vset.pattern.permute.xlu0 0
        %848 = vperm.xlu0 %847, %v834
        %v849 = vpop.permute.xlu0 %848
        %852 = vset.pattern.permute.xlu0 0
        %853 = vperm.xlu0 %852, %v835
        %v854 = vpop.permute.xlu0 %853
        %v856 = vmul.f32 %v823, %v839
        %v857 = vmul.f32 %v824, %v839
        %v858 = vmul.f32 %v825, %v844
        %v859 = vmul.f32 %v826, %v844
        %v860 = vmul.f32 %v827, %v849
        %v861 = vmul.f32 %v828, %v849
        %v862 = vmul.f32 %v829, %v854
        %v863 = vmul.f32 %v830, %v854
        %v864 = vadd.f32 %v777, %v856
        %v865 = vadd.f32 %v778, %v857
        %v866 = vadd.f32 %v779, %v858
        %v867 = vadd.f32 %v780, %v859
        %v868 = vadd.f32 %v781, %v860
        %v869 = vadd.f32 %v782, %v861
        %v870 = vadd.f32 %v783, %v862
        %v871 = vadd.f32 %v784, %v863
        %872 = vrot.lane.b32.xlu0 %v483, 127
        %v873 = vpop.permute.xlu0 %872
        %874 = vrot.lane.b32.xlu0 %v485, 127
        %v875 = vpop.permute.xlu0 %874
        %876 = vrot.lane.b32.xlu0 %v487, 127
        %v877 = vpop.permute.xlu0 %876
        %878 = vrot.lane.b32.xlu0 %v489, 127
        %v879 = vpop.permute.xlu0 %878
        %880 = vrot.lane.b32.xlu0 %v484, 127
        %v881 = vpop.permute.xlu0 %880
        %882 = vrot.lane.b32.xlu0 %v486, 127
        %v883 = vpop.permute.xlu0 %882
        %884 = vrot.lane.b32.xlu0 %v488, 127
        %v885 = vpop.permute.xlu0 %884
        %886 = vrot.lane.b32.xlu0 %v490, 127
        %v887 = vpop.permute.xlu0 %886
        %vm888 = vcmp.lt.s32.totalorder %v541, 127
        %v889 = vsel %vm888, %v873, %v881
        %v890 = vsel %vm888, %v875, %v883
        %v891 = vsel %vm888, %v877, %v885
        %v892 = vsel %vm888, %v879, %v887
        %v893 = vsel %vm888, %v881, %v873
        %v894 = vsel %vm888, %v883, %v875
        %v895 = vsel %vm888, %v885, %v877
        %v896 = vsel %vm888, %v887, %v879
        %s897 = scalar_lea.vmem %s3, 5
        %v898 = vld [vmem:[%s897] ss:$8 sm:$0x3]
        %v900 = vlaneseq
        %v901 = vshrl.u32 %v900, 7
        %v902 = vsub.s32 0, %v901
        %v903 = vrot.slane %v898, %v902
        %v904 = vlaneseq
        %v905 = vshrl.u32 %v904, 7
        %v906 = vsub.s32 1, %v905
        %v907 = vrot.slane %v898, %v906
        %v910 = vmul.f32 %v889, %v903
        %v911 = vmul.f32 %v893, %v907
        %v912 = vmul.f32 %v890, %v903
        %v913 = vmul.f32 %v894, %v907
        %v914 = vmul.f32 %v891, %v903
        %v915 = vmul.f32 %v895, %v907
        %v916 = vmul.f32 %v892, %v903
        %v917 = vmul.f32 %v896, %v907
        %s918 = scalar_lea.vmem %s4, 160
        %v919 = vld [vmem:[%s918] sm:$0xff]
        %v920 = vld [vmem:[%s918 + $0x8] sm:$0xff]
        %v921 = vld [vmem:[%s918 + $0x10] sm:$0xff]
        %v922 = vld [vmem:[%s918 + $0x18] sm:$0xff]
        %924 = vset.pattern.permute.xlu0 0
        %925 = vperm.xlu0 %924, %v919
        %v926 = vpop.permute.xlu0 %925
        %929 = vset.pattern.permute.xlu0 0
        %930 = vperm.xlu0 %929, %v920
        %v931 = vpop.permute.xlu0 %930
        %934 = vset.pattern.permute.xlu0 0
        %935 = vperm.xlu0 %934, %v921
        %v936 = vpop.permute.xlu0 %935
        %939 = vset.pattern.permute.xlu0 0
        %940 = vperm.xlu0 %939, %v922
        %v941 = vpop.permute.xlu0 %940
        %v943 = vmul.f32 %v910, %v926
        %v944 = vmul.f32 %v911, %v926
        %v945 = vmul.f32 %v912, %v931
        %v946 = vmul.f32 %v913, %v931
        %v947 = vmul.f32 %v914, %v936
        %v948 = vmul.f32 %v915, %v936
        %v949 = vmul.f32 %v916, %v941
        %v950 = vmul.f32 %v917, %v941
        %v951 = vadd.f32 %v864, %v943
        %v952 = vadd.f32 %v865, %v944
        %v953 = vadd.f32 %v866, %v945
        %v954 = vadd.f32 %v867, %v946
        %v955 = vadd.f32 %v868, %v947
        %v956 = vadd.f32 %v869, %v948
        %v957 = vadd.f32 %v870, %v949
        %v958 = vadd.f32 %v871, %v950
        %959 = vrot.lane.b32.xlu0 %v483, 113
        %v960 = vpop.permute.xlu0 %959
        %961 = vrot.lane.b32.xlu0 %v485, 113
        %v962 = vpop.permute.xlu0 %961
        %963 = vrot.lane.b32.xlu0 %v487, 113
        %v964 = vpop.permute.xlu0 %963
        %965 = vrot.lane.b32.xlu0 %v489, 113
        %v966 = vpop.permute.xlu0 %965
        %967 = vrot.lane.b32.xlu0 %v484, 113
        %v968 = vpop.permute.xlu0 %967
        %969 = vrot.lane.b32.xlu0 %v486, 113
        %v970 = vpop.permute.xlu0 %969
        %971 = vrot.lane.b32.xlu0 %v488, 113
        %v972 = vpop.permute.xlu0 %971
        %973 = vrot.lane.b32.xlu0 %v490, 113
        %v974 = vpop.permute.xlu0 %973
        %vm975 = vcmp.lt.s32.totalorder %v541, 113
        %v976 = vsel %vm975, %v960, %v968
        %v977 = vsel %vm975, %v962, %v970
        %v978 = vsel %vm975, %v964, %v972
        %v979 = vsel %vm975, %v966, %v974
        %v980 = vsel %vm975, %v968, %v960
        %v981 = vsel %vm975, %v970, %v962
        %v982 = vsel %vm975, %v972, %v964
        %v983 = vsel %vm975, %v974, %v966
        %s984 = scalar_lea.vmem %s3, 6
        %v985 = vld [vmem:[%s984] ss:$8 sm:$0x3]
        %v987 = vlaneseq
        %v988 = vshrl.u32 %v987, 7
        %v989 = vsub.s32 0, %v988
        %v990 = vrot.slane %v985, %v989
        %v991 = vlaneseq
        %v992 = vshrl.u32 %v991, 7
        %v993 = vsub.s32 1, %v992
        %v994 = vrot.slane %v985, %v993
        %v997 = vmul.f32 %v976, %v990
        %v998 = vmul.f32 %v980, %v994
        %v999 = vmul.f32 %v977, %v990
        %v1000 = vmul.f32 %v981, %v994
        %v1001 = vmul.f32 %v978, %v990
        %v1002 = vmul.f32 %v982, %v994
        %v1003 = vmul.f32 %v979, %v990
        %v1004 = vmul.f32 %v983, %v994
        %s1005 = scalar_lea.vmem %s4, 192
        %v1006 = vld [vmem:[%s1005] sm:$0xff]
        %v1007 = vld [vmem:[%s1005 + $0x8] sm:$0xff]
        %v1008 = vld [vmem:[%s1005 + $0x10] sm:$0xff]
        %v1009 = vld [vmem:[%s1005 + $0x18] sm:$0xff]
        %1011 = vset.pattern.permute.xlu0 0
        %1012 = vperm.xlu0 %1011, %v1006
        %v1013 = vpop.permute.xlu0 %1012
        %1016 = vset.pattern.permute.xlu0 0
        %1017 = vperm.xlu0 %1016, %v1007
        %v1018 = vpop.permute.xlu0 %1017
        %1021 = vset.pattern.permute.xlu0 0
        %1022 = vperm.xlu0 %1021, %v1008
        %v1023 = vpop.permute.xlu0 %1022
        %1026 = vset.pattern.permute.xlu0 0
        %1027 = vperm.xlu0 %1026, %v1009
        %v1028 = vpop.permute.xlu0 %1027
        %v1030 = vmul.f32 %v997, %v1013
        %v1031 = vmul.f32 %v998, %v1013
        %v1032 = vmul.f32 %v999, %v1018
        %v1033 = vmul.f32 %v1000, %v1018
        %v1034 = vmul.f32 %v1001, %v1023
        %v1035 = vmul.f32 %v1002, %v1023
        %v1036 = vmul.f32 %v1003, %v1028
        %v1037 = vmul.f32 %v1004, %v1028
        %v1038 = vadd.f32 %v951, %v1030
        %v1039 = vadd.f32 %v952, %v1031
        %v1040 = vadd.f32 %v953, %v1032
        %v1041 = vadd.f32 %v954, %v1033
        %v1042 = vadd.f32 %v955, %v1034
        %v1043 = vadd.f32 %v956, %v1035
        %v1044 = vadd.f32 %v957, %v1036
        %v1045 = vadd.f32 %v958, %v1037
        %1046 = vrot.lane.b32.xlu0 %v483, 112
        %v1047 = vpop.permute.xlu0 %1046
        %1048 = vrot.lane.b32.xlu0 %v485, 112
        %v1049 = vpop.permute.xlu0 %1048
        %1050 = vrot.lane.b32.xlu0 %v487, 112
        %v1051 = vpop.permute.xlu0 %1050
        %1052 = vrot.lane.b32.xlu0 %v489, 112
        %v1053 = vpop.permute.xlu0 %1052
        %1054 = vrot.lane.b32.xlu0 %v484, 112
        %v1055 = vpop.permute.xlu0 %1054
        %1056 = vrot.lane.b32.xlu0 %v486, 112
        %v1057 = vpop.permute.xlu0 %1056
        %1058 = vrot.lane.b32.xlu0 %v488, 112
        %v1059 = vpop.permute.xlu0 %1058
        %1060 = vrot.lane.b32.xlu0 %v490, 112
        %v1061 = vpop.permute.xlu0 %1060
        %vm1062 = vcmp.lt.s32.totalorder %v541, 112
        %v1063 = vsel %vm1062, %v1047, %v1055
        %v1064 = vsel %vm1062, %v1049, %v1057
        %v1065 = vsel %vm1062, %v1051, %v1059
        %v1066 = vsel %vm1062, %v1053, %v1061
        %v1067 = vsel %vm1062, %v1055, %v1047
        %v1068 = vsel %vm1062, %v1057, %v1049
        %v1069 = vsel %vm1062, %v1059, %v1051
        %v1070 = vsel %vm1062, %v1061, %v1053
        %s1071 = scalar_lea.vmem %s3, 7
        %v1072 = vld [vmem:[%s1071] ss:$8 sm:$0x3]
        %v1074 = vlaneseq
        %v1075 = vshrl.u32 %v1074, 7
        %v1076 = vsub.s32 0, %v1075
        %v1077 = vrot.slane %v1072, %v1076
        %v1078 = vlaneseq
        %v1079 = vshrl.u32 %v1078, 7
        %v1080 = vsub.s32 1, %v1079
        %v1081 = vrot.slane %v1072, %v1080
        %v1084 = vmul.f32 %v1063, %v1077
        %v1085 = vmul.f32 %v1067, %v1081
        %v1086 = vmul.f32 %v1064, %v1077
        %v1087 = vmul.f32 %v1068, %v1081
        %v1088 = vmul.f32 %v1065, %v1077
        %v1089 = vmul.f32 %v1069, %v1081
        %v1090 = vmul.f32 %v1066, %v1077
        %v1091 = vmul.f32 %v1070, %v1081
        %s1092 = scalar_lea.vmem %s4, 224
        %v1093 = vld [vmem:[%s1092] sm:$0xff]
        %v1094 = vld [vmem:[%s1092 + $0x8] sm:$0xff]
        %v1095 = vld [vmem:[%s1092 + $0x10] sm:$0xff]
        %v1096 = vld [vmem:[%s1092 + $0x18] sm:$0xff]
        %1098 = vset.pattern.permute.xlu0 0
        %1099 = vperm.xlu0 %1098, %v1093
        %v1100 = vpop.permute.xlu0 %1099
        %1103 = vset.pattern.permute.xlu0 0
        %1104 = vperm.xlu0 %1103, %v1094
        %v1105 = vpop.permute.xlu0 %1104
        %1108 = vset.pattern.permute.xlu0 0
        %1109 = vperm.xlu0 %1108, %v1095
        %v1110 = vpop.permute.xlu0 %1109
        %1113 = vset.pattern.permute.xlu0 0
        %1114 = vperm.xlu0 %1113, %v1096
        %v1115 = vpop.permute.xlu0 %1114
        %v1117 = vmul.f32 %v1084, %v1100
        %v1118 = vmul.f32 %v1085, %v1100
        %v1119 = vmul.f32 %v1086, %v1105
        %v1120 = vmul.f32 %v1087, %v1105
        %v1121 = vmul.f32 %v1088, %v1110
        %v1122 = vmul.f32 %v1089, %v1110
        %v1123 = vmul.f32 %v1090, %v1115
        %v1124 = vmul.f32 %v1091, %v1115
        %v1125 = vadd.f32 %v1038, %v1117
        %v1126 = vadd.f32 %v1039, %v1118
        %v1127 = vadd.f32 %v1040, %v1119
        %v1128 = vadd.f32 %v1041, %v1120
        %v1129 = vadd.f32 %v1042, %v1121
        %v1130 = vadd.f32 %v1043, %v1122
        %v1131 = vadd.f32 %v1044, %v1123
        %v1132 = vadd.f32 %v1045, %v1124
        %1133 = vrot.lane.b32.xlu0 %v483, 111
        %v1134 = vpop.permute.xlu0 %1133
        %1135 = vrot.lane.b32.xlu0 %v485, 111
        %v1136 = vpop.permute.xlu0 %1135
        %1137 = vrot.lane.b32.xlu0 %v487, 111
        %v1138 = vpop.permute.xlu0 %1137
        %1139 = vrot.lane.b32.xlu0 %v489, 111
        %v1140 = vpop.permute.xlu0 %1139
        %1141 = vrot.lane.b32.xlu0 %v484, 111
        %v1142 = vpop.permute.xlu0 %1141
        %1143 = vrot.lane.b32.xlu0 %v486, 111
        %v1144 = vpop.permute.xlu0 %1143
        %1145 = vrot.lane.b32.xlu0 %v488, 111
        %v1146 = vpop.permute.xlu0 %1145
        %1147 = vrot.lane.b32.xlu0 %v490, 111
        %v1148 = vpop.permute.xlu0 %1147
        %vm1149 = vcmp.lt.s32.totalorder %v541, 111
        %v1150 = vsel %vm1149, %v1134, %v1142
        %v1151 = vsel %vm1149, %v1136, %v1144
        %v1152 = vsel %vm1149, %v1138, %v1146
        %v1153 = vsel %vm1149, %v1140, %v1148
        %v1154 = vsel %vm1149, %v1142, %v1134
        %v1155 = vsel %vm1149, %v1144, %v1136
        %v1156 = vsel %vm1149, %v1146, %v1138
        %v1157 = vsel %vm1149, %v1148, %v1140
        %s1158 = scalar_lea.vmem %s3, 16
        %v1159 = vld [vmem:[%s1158] ss:$8 sm:$0x3]
        %v1161 = vlaneseq
        %v1162 = vshrl.u32 %v1161, 7
        %v1163 = vsub.s32 0, %v1162
        %v1164 = vrot.slane %v1159, %v1163
        %v1165 = vlaneseq
        %v1166 = vshrl.u32 %v1165, 7
        %v1167 = vsub.s32 1, %v1166
        %v1168 = vrot.slane %v1159, %v1167
        %v1171 = vmul.f32 %v1150, %v1164
        %v1172 = vmul.f32 %v1154, %v1168
        %v1173 = vmul.f32 %v1151, %v1164
        %v1174 = vmul.f32 %v1155, %v1168
        %v1175 = vmul.f32 %v1152, %v1164
        %v1176 = vmul.f32 %v1156, %v1168
        %v1177 = vmul.f32 %v1153, %v1164
        %v1178 = vmul.f32 %v1157, %v1168
        %s1179 = scalar_lea.vmem %s4, 256
        %v1180 = vld [vmem:[%s1179] sm:$0xff]
        %v1181 = vld [vmem:[%s1179 + $0x8] sm:$0xff]
        %v1182 = vld [vmem:[%s1179 + $0x10] sm:$0xff]
        %v1183 = vld [vmem:[%s1179 + $0x18] sm:$0xff]
        %1185 = vset.pattern.permute.xlu0 0
        %1186 = vperm.xlu0 %1185, %v1180
        %v1187 = vpop.permute.xlu0 %1186
        %1190 = vset.pattern.permute.xlu0 0
        %1191 = vperm.xlu0 %1190, %v1181
        %v1192 = vpop.permute.xlu0 %1191
        %1195 = vset.pattern.permute.xlu0 0
        %1196 = vperm.xlu0 %1195, %v1182
        %v1197 = vpop.permute.xlu0 %1196
        %1200 = vset.pattern.permute.xlu0 0
        %1201 = vperm.xlu0 %1200, %v1183
        %v1202 = vpop.permute.xlu0 %1201
        %v1204 = vmul.f32 %v1171, %v1187
        %v1205 = vmul.f32 %v1172, %v1187
        %v1206 = vmul.f32 %v1173, %v1192
        %v1207 = vmul.f32 %v1174, %v1192
        %v1208 = vmul.f32 %v1175, %v1197
        %v1209 = vmul.f32 %v1176, %v1197
        %v1210 = vmul.f32 %v1177, %v1202
        %v1211 = vmul.f32 %v1178, %v1202
        %v1212 = vadd.f32 %v1125, %v1204
        %v1213 = vadd.f32 %v1126, %v1205
        %v1214 = vadd.f32 %v1127, %v1206
        %v1215 = vadd.f32 %v1128, %v1207
        %v1216 = vadd.f32 %v1129, %v1208
        %v1217 = vadd.f32 %v1130, %v1209
        %v1218 = vadd.f32 %v1131, %v1210
        %v1219 = vadd.f32 %v1132, %v1211
        %v1220 = vld [vmem:[%s5] sm:$0xff]
        %v1221 = vld [vmem:[%s5 + $0x8] sm:$0xff]
        %v1222 = vld [vmem:[%s5 + $0x10] sm:$0xff]
        %v1223 = vld [vmem:[%s5 + $0x18] sm:$0xff]
        %1225 = vset.pattern.permute.xlu0 0
        %1226 = vperm.xlu0 %1225, %v1220
        %v1227 = vpop.permute.xlu0 %1226
        %1230 = vset.pattern.permute.xlu0 0
        %1231 = vperm.xlu0 %1230, %v1221
        %v1232 = vpop.permute.xlu0 %1231
        %1235 = vset.pattern.permute.xlu0 0
        %1236 = vperm.xlu0 %1235, %v1222
        %v1237 = vpop.permute.xlu0 %1236
        %1240 = vset.pattern.permute.xlu0 0
        %1241 = vperm.xlu0 %1240, %v1223
        %v1242 = vpop.permute.xlu0 %1241
        %v1244 = vadd.f32 %v1212, %v1227
        %v1245 = vadd.f32 %v1213, %v1227
        %v1246 = vadd.f32 %v1214, %v1232
        %v1247 = vadd.f32 %v1215, %v1232
        %v1248 = vadd.f32 %v1216, %v1237
        %v1249 = vadd.f32 %v1217, %v1237
        %v1250 = vadd.f32 %v1218, %v1242
        %v1251 = vadd.f32 %v1219, %v1242
        %v1252 = vadd.f32 %v1244, 3.0
        %v1253 = vadd.f32 %v1245, 3.0
        %v1254 = vadd.f32 %v1246, 3.0
        %v1255 = vadd.f32 %v1247, 3.0
        %v1256 = vadd.f32 %v1248, 3.0
        %v1257 = vadd.f32 %v1249, 3.0
        %v1258 = vadd.f32 %v1250, 3.0
        %v1259 = vadd.f32 %v1251, 3.0
        %v1260 = vmax.f32 %v1252, 0.0
        %v1261 = vmax.f32 %v1253, 0.0
        %v1262 = vmax.f32 %v1254, 0.0
        %v1263 = vmax.f32 %v1255, 0.0
        %v1264 = vmax.f32 %v1256, 0.0
        %v1265 = vmax.f32 %v1257, 0.0
        %v1266 = vmax.f32 %v1258, 0.0
        %v1267 = vmax.f32 %v1259, 0.0
        %v1268 = vmin.f32 %v1260, 6.0
        %v1269 = vmin.f32 %v1261, 6.0
        %v1270 = vmin.f32 %v1262, 6.0
        %v1271 = vmin.f32 %v1263, 6.0
        %v1272 = vmin.f32 %v1264, 6.0
        %v1273 = vmin.f32 %v1265, 6.0
        %v1274 = vmin.f32 %v1266, 6.0
        %v1275 = vmin.f32 %v1267, 6.0
        %v1276 = vmul.f32 %v1244, %v1268
        %v1277 = vmul.f32 %v1245, %v1269
        %v1278 = vmul.f32 %v1246, %v1270
        %v1279 = vmul.f32 %v1247, %v1271
        %v1280 = vmul.f32 %v1248, %v1272
        %v1281 = vmul.f32 %v1249, %v1273
        %v1282 = vmul.f32 %v1250, %v1274
        %v1283 = vmul.f32 %v1251, %v1275
        %v1284 = vmul.f32 %v1276, 0.16666667
        %v1285 = vmul.f32 %v1277, 0.16666667
        %v1286 = vmul.f32 %v1278, 0.16666667
        %v1287 = vmul.f32 %v1279, 0.16666667
        %v1288 = vmul.f32 %v1280, 0.16666667
        %v1289 = vmul.f32 %v1281, 0.16666667
        %v1290 = vmul.f32 %v1282, 0.16666667
        %v1291 = vmul.f32 %v1283, 0.16666667
        %v1292 = vld [vmem:[%s6] sm:$0xff]
        %v1293 = vld [vmem:[%s6 + $0x8] sm:$0xff]
        %v1294 = vld [vmem:[%s6 + $0x10] sm:$0xff]
        %v1295 = vld [vmem:[%s6 + $0x18] sm:$0xff]
        %vm1296 = vcmask 261120
        %v1298 = vsel %vm1296, %v1292, 0
        %v1301 = vsel %vm1296, %v1293, 0
        %v1304 = vsel %vm1296, %v1294, 0
        %v1307 = vsel %vm1296, %v1295, 0
        %1309 = vmatprep.subr.mxu0 %v1285
        %1310 = vmatpush1.msra.mxu0 %v1284
        %1311 = vmatprep.subr.mxu0 %v1287
        %1312 = vmatpush1.msra.mxu0 %v1286
        %1313 = vmatprep.subr.mxu0 %v1289
        %1314 = vmatpush1.msra.mxu0 %v1288
        %1315 = vmatprep.subr.mxu0 %v1291
        %1316 = vmatpush1.msra.mxu0 %v1290
        %1317 = vmatprep.subr.mxu0 0.0
        %1318 = vmatpush1.msra.mxu0 0.0
        %1319 = vmatprep.subr.mxu0 0.0
        %1320 = vmatpush1.msra.mxu0 0.0
        %1321 = vmatprep.subr.mxu0 0.0
        %1322 = vmatpush1.msra.mxu0 0.0
        %1323 = vmatprep.subr.mxu0 0.0
        %1324 = vmatpush1.msra.mxu0 0.0
        %1325 = vmatprep.subr.mxu0 0.0
        %1326 = vmatpush1.msra.mxu0 0.0
        %1327 = vmatprep.subr.mxu0 0.0
        %1328 = vmatpush1.msra.mxu0 0.0
        %1329 = vmatprep.subr.mxu0 0.0
        %1330 = vmatpush1.msra.mxu0 0.0
        %1331 = vmatprep.subr.mxu0 0.0
        %1332 = vmatpush1.msra.mxu0 0.0
        %1333 = vmatprep.subr.mxu0 0.0
        %1334 = vmatpush1.msra.mxu0 0.0
        %1335 = vmatprep.subr.mxu0 0.0
        %1336 = vmatpush1.msra.mxu0 0.0
        %1337 = vmatprep.subr.mxu0 0.0
        %1338 = vmatpush1.msra.mxu0 0.0
        %1339 = vmatprep.subr.mxu0 0.0
        %1340 = vmatpush1.msra.mxu0 0.0
        %1341 = vmatprep.subr.mxu0 0.0
        %1342 = vmatpush1.msra.mxu0 0.0
        %1343 = vmatprep.subr.mxu0 0.0
        %1344 = vmatpush1.msra.mxu0 0.0
        %1345 = vmatprep.subr.mxu0 0.0
        %1346 = vmatpush1.msra.mxu0 0.0
        %1347 = vmatprep.subr.mxu0 0.0
        %1348 = vmatpush1.msra.mxu0 0.0
        %1349 = vmatprep.subr.mxu0 0.0
        %1350 = vmatpush1.msra.mxu0 0.0
        %1351 = vmatprep.subr.mxu0 0.0
        %1352 = vmatpush1.msra.mxu0 0.0
        %1353 = vmatprep.subr.mxu0 0.0
        %1354 = vmatpush1.msra.mxu0 0.0
        %1355 = vmatprep.subr.mxu0 0.0
        %1356 = vmatpush1.msra.mxu0 0.0
        %1357 = vmatprep.subr.mxu0 0.0
        %1358 = vmatpush1.msra.mxu0 0.0
        %1359 = vmatprep.subr.mxu0 0.0
        %1360 = vmatpush1.msra.mxu0 0.0
        %1361 = vmatprep.subr.mxu0 0.0
        %1362 = vmatpush1.msra.mxu0 0.0
        %1363 = vmatprep.subr.mxu0 0.0
        %1364 = vmatpush1.msra.mxu0 0.0
        %1365 = vmatprep.subr.mxu0 0.0
        %1366 = vmatpush1.msra.mxu0 0.0
        %1367 = vmatprep.subr.mxu0 0.0
        %1368 = vmatpush1.msra.mxu0 0.0
        %1369 = vmatprep.subr.mxu0 0.0
        %1370 = vmatpush1.msra.mxu0 0.0
        %1371 = vmatprep.subr.mxu0 0.0
        %1372 = vmatpush1.msra.mxu0 0.0
        %1373 = vmatprep.mubr.f32.mxu0 0.0
        %1374 = vmatmul.mubr.f32.gmra.mrb[0].mxu0 %v1298
        %v1375 = vpop.f32.mrb[0].mxu0
        %v1376 = vadd.f32 0.0, %v1375
        %v1377 = vpop.f32.mrb[0].mxu0
        %v1378 = vadd.f32 0.0, %v1377
        %1379 = vmatprep.mubr.f32.mxu0 0.0
        %1380 = vmatmul.mubr.f32.gmra.mrb[0].mxu0 %v1301
        %v1381 = vpop.f32.mrb[0].mxu0
        %v1382 = vadd.f32 0.0, %v1381
        %v1383 = vpop.f32.mrb[0].mxu0
        %v1384 = vadd.f32 0.0, %v1383
        %1385 = vmatprep.mubr.f32.mxu0 0.0
        %1386 = vmatmul.mubr.f32.gmra.mrb[0].mxu0 %v1304
        %v1387 = vpop.f32.mrb[0].mxu0
        %v1388 = vadd.f32 0.0, %v1387
        %v1389 = vpop.f32.mrb[0].mxu0
        %v1390 = vadd.f32 0.0, %v1389
        %1391 = vmatprep.mubr.f32.mxu0 0.0
        %1392 = vmatmul.mubr.f32.gmra.mrb[0].mxu0 %v1307
        %v1393 = vpop.f32.mrb[0].mxu0
        %v1394 = vadd.f32 0.0, %v1393
        %v1395 = vpop.f32.mrb[0].mxu0
        %v1396 = vadd.f32 0.0, %v1395
        %1397 = vdwg.mxu0
        %v1398 = vadd.f32 %v483, %v1376
        %v1399 = vadd.f32 %v484, %v1378
        %v1400 = vadd.f32 %v485, %v1382
        %v1401 = vadd.f32 %v486, %v1384
        %v1402 = vadd.f32 %v487, %v1388
        %v1403 = vadd.f32 %v488, %v1390
        %v1404 = vadd.f32 %v489, %v1394
        %v1405 = vadd.f32 %v490, %v1396
        %v1406 = vld [vmem:[%s7] sm:$0xff]
        %v1407 = vld [vmem:[%s7 + $0x8] sm:$0xff]
        %v1408 = vld [vmem:[%s7 + $0x10] sm:$0xff]
        %v1409 = vld [vmem:[%s7 + $0x18] sm:$0xff]
        %1411 = vset.pattern.permute.xlu0 0
        %1412 = vperm.xlu0 %1411, %v1406
        %v1413 = vpop.permute.xlu0 %1412
        %1416 = vset.pattern.permute.xlu0 0
        %1417 = vperm.xlu0 %1416, %v1407
        %v1418 = vpop.permute.xlu0 %1417
        %1421 = vset.pattern.permute.xlu0 0
        %1422 = vperm.xlu0 %1421, %v1408
        %v1423 = vpop.permute.xlu0 %1422
        %1426 = vset.pattern.permute.xlu0 0
        %1427 = vperm.xlu0 %1426, %v1409
        %v1428 = vpop.permute.xlu0 %1427
        %v1430 = vadd.f32 %v1398, %v1413
        %v1431 = vadd.f32 %v1399, %v1413
        %v1432 = vadd.f32 %v1400, %v1418
        %v1433 = vadd.f32 %v1401, %v1418
        %v1434 = vadd.f32 %v1402, %v1423
        %v1435 = vadd.f32 %v1403, %v1423
        %v1436 = vadd.f32 %v1404, %v1428
        %v1437 = vadd.f32 %v1405, %v1428
        %s1438 = scalar_lea.vmem %s4, 416
        %v1439 = vld [vmem:[%s1438] sm:$0xff]
        %v1440 = vld [vmem:[%s1438 + $0x8] sm:$0xff]
        %v1441 = vld [vmem:[%s1438 + $0x10] sm:$0xff]
        %v1442 = vld [vmem:[%s1438 + $0x18] sm:$0xff]
        %1444 = vset.pattern.permute.xlu0 0
        %1445 = vperm.xlu0 %1444, %v1439
        %v1446 = vpop.permute.xlu0 %1445
        %1449 = vset.pattern.permute.xlu0 0
        %1450 = vperm.xlu0 %1449, %v1440
        %v1451 = vpop.permute.xlu0 %1450
        %1454 = vset.pattern.permute.xlu0 0
        %1455 = vperm.xlu0 %1454, %v1441
        %v1456 = vpop.permute.xlu0 %1455
        %1459 = vset.pattern.permute.xlu0 0
        %1460 = vperm.xlu0 %1459, %v1442
        %v1461 = vpop.permute.xlu0 %1460
        %v1463 = vmul.f32 %v1430, %v1446
        %v1464 = vmul.f32 %v1431, %v1446
        %v1465 = vmul.f32 %v1432, %v1451
        %v1466 = vmul.f32 %v1433, %v1451
        %v1467 = vmul.f32 %v1434, %v1456
        %v1468 = vmul.f32 %v1435, %v1456
        %v1469 = vmul.f32 %v1436, %v1461
        %v1470 = vmul.f32 %v1437, %v1461
        %1471 = vrot.lane.b32.xlu0 %v1430, 17
        %v1472 = vpop.permute.xlu0 %1471
        %1473 = vrot.lane.b32.xlu0 %v1432, 17
        %v1474 = vpop.permute.xlu0 %1473
        %1475 = vrot.lane.b32.xlu0 %v1434, 17
        %v1476 = vpop.permute.xlu0 %1475
        %1477 = vrot.lane.b32.xlu0 %v1436, 17
        %v1478 = vpop.permute.xlu0 %1477
        %1479 = vrot.lane.b32.xlu0 %v1431, 17
        %v1480 = vpop.permute.xlu0 %1479
        %1481 = vrot.lane.b32.xlu0 %v1433, 17
        %v1482 = vpop.permute.xlu0 %1481
        %1483 = vrot.lane.b32.xlu0 %v1435, 17
        %v1484 = vpop.permute.xlu0 %1483
        %1485 = vrot.lane.b32.xlu0 %v1437, 17
        %v1486 = vpop.permute.xlu0 %1485
        %v1487 = vsel %vm542, %v1472, %v1480
        %v1488 = vsel %vm542, %v1474, %v1482
        %v1489 = vsel %vm542, %v1476, %v1484
        %v1490 = vsel %vm542, %v1478, %v1486
        %v1491 = vsel %vm542, %v1480, %v1472
        %v1492 = vsel %vm542, %v1482, %v1474
        %v1493 = vsel %vm542, %v1484, %v1476
        %v1494 = vsel %vm542, %v1486, %v1478
        %v1495 = vmul.f32 %v1491, %v556
        %v1496 = vmul.f32 %v1487, %v560
        %v1497 = vmul.f32 %v1492, %v556
        %v1498 = vmul.f32 %v1488, %v560
        %v1499 = vmul.f32 %v1493, %v556
        %v1500 = vmul.f32 %v1489, %v560
        %v1501 = vmul.f32 %v1494, %v556
        %v1502 = vmul.f32 %v1490, %v560
        %s1503 = scalar_lea.vmem %s4, 288
        %v1504 = vld [vmem:[%s1503] sm:$0xff]
        %v1505 = vld [vmem:[%s1503 + $0x8] sm:$0xff]
        %v1506 = vld [vmem:[%s1503 + $0x10] sm:$0xff]
        %v1507 = vld [vmem:[%s1503 + $0x18] sm:$0xff]
        %1509 = vset.pattern.permute.xlu0 0
        %1510 = vperm.xlu0 %1509, %v1504
        %v1511 = vpop.permute.xlu0 %1510
        %1514 = vset.pattern.permute.xlu0 0
        %1515 = vperm.xlu0 %1514, %v1505
        %v1516 = vpop.permute.xlu0 %1515
        %1519 = vset.pattern.permute.xlu0 0
        %1520 = vperm.xlu0 %1519, %v1506
        %v1521 = vpop.permute.xlu0 %1520
        %1524 = vset.pattern.permute.xlu0 0
        %1525 = vperm.xlu0 %1524, %v1507
        %v1526 = vpop.permute.xlu0 %1525
        %v1528 = vmul.f32 %v1495, %v1511
        %v1529 = vmul.f32 %v1496, %v1511
        %v1530 = vmul.f32 %v1497, %v1516
        %v1531 = vmul.f32 %v1498, %v1516
        %v1532 = vmul.f32 %v1499, %v1521
        %v1533 = vmul.f32 %v1500, %v1521
        %v1534 = vmul.f32 %v1501, %v1526
        %v1535 = vmul.f32 %v1502, %v1526
        %v1536 = vadd.f32 %v1463, %v1528
        %v1537 = vadd.f32 %v1464, %v1529
        %v1538 = vadd.f32 %v1465, %v1530
        %v1539 = vadd.f32 %v1466, %v1531
        %v1540 = vadd.f32 %v1467, %v1532
        %v1541 = vadd.f32 %v1468, %v1533
        %v1542 = vadd.f32 %v1469, %v1534
        %v1543 = vadd.f32 %v1470, %v1535
        %1544 = vrot.lane.b32.xlu0 %v1430, 16
        %v1545 = vpop.permute.xlu0 %1544
        %1546 = vrot.lane.b32.xlu0 %v1432, 16
        %v1547 = vpop.permute.xlu0 %1546
        %1548 = vrot.lane.b32.xlu0 %v1434, 16
        %v1549 = vpop.permute.xlu0 %1548
        %1550 = vrot.lane.b32.xlu0 %v1436, 16
        %v1551 = vpop.permute.xlu0 %1550
        %1552 = vrot.lane.b32.xlu0 %v1431, 16
        %v1553 = vpop.permute.xlu0 %1552
        %1554 = vrot.lane.b32.xlu0 %v1433, 16
        %v1555 = vpop.permute.xlu0 %1554
        %1556 = vrot.lane.b32.xlu0 %v1435, 16
        %v1557 = vpop.permute.xlu0 %1556
        %1558 = vrot.lane.b32.xlu0 %v1437, 16
        %v1559 = vpop.permute.xlu0 %1558
        %v1560 = vsel %vm627, %v1545, %v1553
        %v1561 = vsel %vm627, %v1547, %v1555
        %v1562 = vsel %vm627, %v1549, %v1557
        %v1563 = vsel %vm627, %v1551, %v1559
        %v1564 = vsel %vm627, %v1553, %v1545
        %v1565 = vsel %vm627, %v1555, %v1547
        %v1566 = vsel %vm627, %v1557, %v1549
        %v1567 = vsel %vm627, %v1559, %v1551
        %v1568 = vmul.f32 %v1564, %v642
        %v1569 = vmul.f32 %v1560, %v646
        %v1570 = vmul.f32 %v1565, %v642
        %v1571 = vmul.f32 %v1561, %v646
        %v1572 = vmul.f32 %v1566, %v642
        %v1573 = vmul.f32 %v1562, %v646
        %v1574 = vmul.f32 %v1567, %v642
        %v1575 = vmul.f32 %v1563, %v646
        %s1576 = scalar_lea.vmem %s4, 320
        %v1577 = vld [vmem:[%s1576] sm:$0xff]
        %v1578 = vld [vmem:[%s1576 + $0x8] sm:$0xff]
        %v1579 = vld [vmem:[%s1576 + $0x10] sm:$0xff]
        %v1580 = vld [vmem:[%s1576 + $0x18] sm:$0xff]
        %1582 = vset.pattern.permute.xlu0 0
        %1583 = vperm.xlu0 %1582, %v1577
        %v1584 = vpop.permute.xlu0 %1583
        %1587 = vset.pattern.permute.xlu0 0
        %1588 = vperm.xlu0 %1587, %v1578
        %v1589 = vpop.permute.xlu0 %1588
        %1592 = vset.pattern.permute.xlu0 0
        %1593 = vperm.xlu0 %1592, %v1579
        %v1594 = vpop.permute.xlu0 %1593
        %1597 = vset.pattern.permute.xlu0 0
        %1598 = vperm.xlu0 %1597, %v1580
        %v1599 = vpop.permute.xlu0 %1598
        %v1601 = vmul.f32 %v1568, %v1584
        %v1602 = vmul.f32 %v1569, %v1584
        %v1603 = vmul.f32 %v1570, %v1589
        %v1604 = vmul.f32 %v1571, %v1589
        %v1605 = vmul.f32 %v1572, %v1594
        %v1606 = vmul.f32 %v1573, %v1594
        %v1607 = vmul.f32 %v1574, %v1599
        %v1608 = vmul.f32 %v1575, %v1599
        %v1609 = vadd.f32 %v1536, %v1601
        %v1610 = vadd.f32 %v1537, %v1602
        %v1611 = vadd.f32 %v1538, %v1603
        %v1612 = vadd.f32 %v1539, %v1604
        %v1613 = vadd.f32 %v1540, %v1605
        %v1614 = vadd.f32 %v1541, %v1606
        %v1615 = vadd.f32 %v1542, %v1607
        %v1616 = vadd.f32 %v1543, %v1608
        %1617 = vrot.lane.b32.xlu0 %v1430, 15
        %v1618 = vpop.permute.xlu0 %1617
        %1619 = vrot.lane.b32.xlu0 %v1432, 15
        %v1620 = vpop.permute.xlu0 %1619
        %1621 = vrot.lane.b32.xlu0 %v1434, 15
        %v1622 = vpop.permute.xlu0 %1621
        %1623 = vrot.lane.b32.xlu0 %v1436, 15
        %v1624 = vpop.permute.xlu0 %1623
        %1625 = vrot.lane.b32.xlu0 %v1431, 15
        %v1626 = vpop.permute.xlu0 %1625
        %1627 = vrot.lane.b32.xlu0 %v1433, 15
        %v1628 = vpop.permute.xlu0 %1627
        %1629 = vrot.lane.b32.xlu0 %v1435, 15
        %v1630 = vpop.permute.xlu0 %1629
        %1631 = vrot.lane.b32.xlu0 %v1437, 15
        %v1632 = vpop.permute.xlu0 %1631
        %v1633 = vsel %vm714, %v1618, %v1626
        %v1634 = vsel %vm714, %v1620, %v1628
        %v1635 = vsel %vm714, %v1622, %v1630
        %v1636 = vsel %vm714, %v1624, %v1632
        %v1637 = vsel %vm714, %v1626, %v1618
        %v1638 = vsel %vm714, %v1628, %v1620
        %v1639 = vsel %vm714, %v1630, %v1622
        %v1640 = vsel %vm714, %v1632, %v1624
        %v1641 = vmul.f32 %v1637, %v729
        %v1642 = vmul.f32 %v1633, %v733
        %v1643 = vmul.f32 %v1638, %v729
        %v1644 = vmul.f32 %v1634, %v733
        %v1645 = vmul.f32 %v1639, %v729
        %v1646 = vmul.f32 %v1635, %v733
        %v1647 = vmul.f32 %v1640, %v729
        %v1648 = vmul.f32 %v1636, %v733
        %s1649 = scalar_lea.vmem %s4, 352
        %v1650 = vld [vmem:[%s1649] sm:$0xff]
        %v1651 = vld [vmem:[%s1649 + $0x8] sm:$0xff]
        %v1652 = vld [vmem:[%s1649 + $0x10] sm:$0xff]
        %v1653 = vld [vmem:[%s1649 + $0x18] sm:$0xff]
        %1655 = vset.pattern.permute.xlu0 0
        %1656 = vperm.xlu0 %1655, %v1650
        %v1657 = vpop.permute.xlu0 %1656
        %1660 = vset.pattern.permute.xlu0 0
        %1661 = vperm.xlu0 %1660, %v1651
        %v1662 = vpop.permute.xlu0 %1661
        %1665 = vset.pattern.permute.xlu0 0
        %1666 = vperm.xlu0 %1665, %v1652
        %v1667 = vpop.permute.xlu0 %1666
        %1670 = vset.pattern.permute.xlu0 0
        %1671 = vperm.xlu0 %1670, %v1653
        %v1672 = vpop.permute.xlu0 %1671
        %v1674 = vmul.f32 %v1641, %v1657
        %v1675 = vmul.f32 %v1642, %v1657
        %v1676 = vmul.f32 %v1643, %v1662
        %v1677 = vmul.f32 %v1644, %v1662
        %v1678 = vmul.f32 %v1645, %v1667
        %v1679 = vmul.f32 %v1646, %v1667
        %v1680 = vmul.f32 %v1647, %v1672
        %v1681 = vmul.f32 %v1648, %v1672
        %v1682 = vadd.f32 %v1609, %v1674
        %v1683 = vadd.f32 %v1610, %v1675
        %v1684 = vadd.f32 %v1611, %v1676
        %v1685 = vadd.f32 %v1612, %v1677
        %v1686 = vadd.f32 %v1613, %v1678
        %v1687 = vadd.f32 %v1614, %v1679
        %v1688 = vadd.f32 %v1615, %v1680
        %v1689 = vadd.f32 %v1616, %v1681
        %1690 = vrot.lane.b32.xlu0 %v1430, 1
        %v1691 = vpop.permute.xlu0 %1690
        %1692 = vrot.lane.b32.xlu0 %v1432, 1
        %v1693 = vpop.permute.xlu0 %1692
        %1694 = vrot.lane.b32.xlu0 %v1434, 1
        %v1695 = vpop.permute.xlu0 %1694
        %1696 = vrot.lane.b32.xlu0 %v1436, 1
        %v1697 = vpop.permute.xlu0 %1696
        %1698 = vrot.lane.b32.xlu0 %v1431, 1
        %v1699 = vpop.permute.xlu0 %1698
        %1700 = vrot.lane.b32.xlu0 %v1433, 1
        %v1701 = vpop.permute.xlu0 %1700
        %1702 = vrot.lane.b32.xlu0 %v1435, 1
        %v1703 = vpop.permute.xlu0 %1702
        %1704 = vrot.lane.b32.xlu0 %v1437, 1
        %v1705 = vpop.permute.xlu0 %1704
        %v1706 = vsel %vm801, %v1691, %v1699
        %v1707 = vsel %vm801, %v1693, %v1701
        %v1708 = vsel %vm801, %v1695, %v1703
        %v1709 = vsel %vm801, %v1697, %v1705
        %v1710 = vsel %vm801, %v1699, %v1691
        %v1711 = vsel %vm801, %v1701, %v1693
        %v1712 = vsel %vm801, %v1703, %v1695
        %v1713 = vsel %vm801, %v1705, %v1697
        %v1714 = vmul.f32 %v1710, %v816
        %v1715 = vmul.f32 %v1706, %v820
        %v1716 = vmul.f32 %v1711, %v816
        %v1717 = vmul.f32 %v1707, %v820
        %v1718 = vmul.f32 %v1712, %v816
        %v1719 = vmul.f32 %v1708, %v820
        %v1720 = vmul.f32 %v1713, %v816
        %v1721 = vmul.f32 %v1709, %v820
        %s1722 = scalar_lea.vmem %s4, 384
        %v1723 = vld [vmem:[%s1722] sm:$0xff]
        %v1724 = vld [vmem:[%s1722 + $0x8] sm:$0xff]
        %v1725 = vld [vmem:[%s1722 + $0x10] sm:$0xff]
        %v1726 = vld [vmem:[%s1722 + $0x18] sm:$0xff]
        %1728 = vset.pattern.permute.xlu0 0
        %1729 = vperm.xlu0 %1728, %v1723
        %v1730 = vpop.permute.xlu0 %1729
        %1733 = vset.pattern.permute.xlu0 0
        %1734 = vperm.xlu0 %1733, %v1724
        %v1735 = vpop.permute.xlu0 %1734
        %1738 = vset.pattern.permute.xlu0 0
        %1739 = vperm.xlu0 %1738, %v1725
        %v1740 = vpop.permute.xlu0 %1739
        %1743 = vset.pattern.permute.xlu0 0
        %1744 = vperm.xlu0 %1743, %v1726
        %v1745 = vpop.permute.xlu0 %1744
        %v1747 = vmul.f32 %v1714, %v1730
        %v1748 = vmul.f32 %v1715, %v1730
        %v1749 = vmul.f32 %v1716, %v1735
        %v1750 = vmul.f32 %v1717, %v1735
        %v1751 = vmul.f32 %v1718, %v1740
        %v1752 = vmul.f32 %v1719, %v1740
        %v1753 = vmul.f32 %v1720, %v1745
        %v1754 = vmul.f32 %v1721, %v1745
        %v1755 = vadd.f32 %v1682, %v1747
        %v1756 = vadd.f32 %v1683, %v1748
        %v1757 = vadd.f32 %v1684, %v1749
        %v1758 = vadd.f32 %v1685, %v1750
        %v1759 = vadd.f32 %v1686, %v1751
        %v1760 = vadd.f32 %v1687, %v1752
        %v1761 = vadd.f32 %v1688, %v1753
        %v1762 = vadd.f32 %v1689, %v1754
        %1763 = vrot.lane.b32.xlu0 %v1430, 127
        %v1764 = vpop.permute.xlu0 %1763
        %1765 = vrot.lane.b32.xlu0 %v1432, 127
        %v1766 = vpop.permute.xlu0 %1765
        %1767 = vrot.lane.b32.xlu0 %v1434, 127
        %v1768 = vpop.permute.xlu0 %1767
        %1769 = vrot.lane.b32.xlu0 %v1436, 127
        %v1770 = vpop.permute.xlu0 %1769
        %1771 = vrot.lane.b32.xlu0 %v1431, 127
        %v1772 = vpop.permute.xlu0 %1771
        %1773 = vrot.lane.b32.xlu0 %v1433, 127
        %v1774 = vpop.permute.xlu0 %1773
        %1775 = vrot.lane.b32.xlu0 %v1435, 127
        %v1776 = vpop.permute.xlu0 %1775
        %1777 = vrot.lane.b32.xlu0 %v1437, 127
        %v1778 = vpop.permute.xlu0 %1777
        %v1779 = vsel %vm888, %v1764, %v1772
        %v1780 = vsel %vm888, %v1766, %v1774
        %v1781 = vsel %vm888, %v1768, %v1776
        %v1782 = vsel %vm888, %v1770, %v1778
        %v1783 = vsel %vm888, %v1772, %v1764
        %v1784 = vsel %vm888, %v1774, %v1766
        %v1785 = vsel %vm888, %v1776, %v1768
        %v1786 = vsel %vm888, %v1778, %v1770
        %v1787 = vmul.f32 %v1779, %v903
        %v1788 = vmul.f32 %v1783, %v907
        %v1789 = vmul.f32 %v1780, %v903
        %v1790 = vmul.f32 %v1784, %v907
        %v1791 = vmul.f32 %v1781, %v903
        %v1792 = vmul.f32 %v1785, %v907
        %v1793 = vmul.f32 %v1782, %v903
        %v1794 = vmul.f32 %v1786, %v907
        %s1795 = scalar_lea.vmem %s4, 448
        %v1796 = vld [vmem:[%s1795] sm:$0xff]
        %v1797 = vld [vmem:[%s1795 + $0x8] sm:$0xff]
        %v1798 = vld [vmem:[%s1795 + $0x10] sm:$0xff]
        %v1799 = vld [vmem:[%s1795 + $0x18] sm:$0xff]
        %1801 = vset.pattern.permute.xlu0 0
        %1802 = vperm.xlu0 %1801, %v1796
        %v1803 = vpop.permute.xlu0 %1802
        %1806 = vset.pattern.permute.xlu0 0
        %1807 = vperm.xlu0 %1806, %v1797
        %v1808 = vpop.permute.xlu0 %1807
        %1811 = vset.pattern.permute.xlu0 0
        %1812 = vperm.xlu0 %1811, %v1798
        %v1813 = vpop.permute.xlu0 %1812
        %1816 = vset.pattern.permute.xlu0 0
        %1817 = vperm.xlu0 %1816, %v1799
        %v1818 = vpop.permute.xlu0 %1817
        %v1820 = vmul.f32 %v1787, %v1803
        %v1821 = vmul.f32 %v1788, %v1803
        %v1822 = vmul.f32 %v1789, %v1808
        %v1823 = vmul.f32 %v1790, %v1808
        %v1824 = vmul.f32 %v1791, %v1813
        %v1825 = vmul.f32 %v1792, %v1813
        %v1826 = vmul.f32 %v1793, %v1818
        %v1827 = vmul.f32 %v1794, %v1818
        %v1828 = vadd.f32 %v1755, %v1820
        %v1829 = vadd.f32 %v1756, %v1821
        %v1830 = vadd.f32 %v1757, %v1822
        %v1831 = vadd.f32 %v1758, %v1823
        %v1832 = vadd.f32 %v1759, %v1824
        %v1833 = vadd.f32 %v1760, %v1825
        %v1834 = vadd.f32 %v1761, %v1826
        %v1835 = vadd.f32 %v1762, %v1827
        %1836 = vrot.lane.b32.xlu0 %v1430, 113
        %v1837 = vpop.permute.xlu0 %1836
        %1838 = vrot.lane.b32.xlu0 %v1432, 113
        %v1839 = vpop.permute.xlu0 %1838
        %1840 = vrot.lane.b32.xlu0 %v1434, 113
        %v1841 = vpop.permute.xlu0 %1840
        %1842 = vrot.lane.b32.xlu0 %v1436, 113
        %v1843 = vpop.permute.xlu0 %1842
        %1844 = vrot.lane.b32.xlu0 %v1431, 113
        %v1845 = vpop.permute.xlu0 %1844
        %1846 = vrot.lane.b32.xlu0 %v1433, 113
        %v1847 = vpop.permute.xlu0 %1846
        %1848 = vrot.lane.b32.xlu0 %v1435, 113
        %v1849 = vpop.permute.xlu0 %1848
        %1850 = vrot.lane.b32.xlu0 %v1437, 113
        %v1851 = vpop.permute.xlu0 %1850
        %v1852 = vsel %vm975, %v1837, %v1845
        %v1853 = vsel %vm975, %v1839, %v1847
        %v1854 = vsel %vm975, %v1841, %v1849
        %v1855 = vsel %vm975, %v1843, %v1851
        %v1856 = vsel %vm975, %v1845, %v1837
        %v1857 = vsel %vm975, %v1847, %v1839
        %v1858 = vsel %vm975, %v1849, %v1841
        %v1859 = vsel %vm975, %v1851, %v1843
        %v1860 = vmul.f32 %v1852, %v990
        %v1861 = vmul.f32 %v1856, %v994
        %v1862 = vmul.f32 %v1853, %v990
        %v1863 = vmul.f32 %v1857, %v994
        %v1864 = vmul.f32 %v1854, %v990
        %v1865 = vmul.f32 %v1858, %v994
        %v1866 = vmul.f32 %v1855, %v990
        %v1867 = vmul.f32 %v1859, %v994
        %s1868 = scalar_lea.vmem %s4, 480
        %v1869 = vld [vmem:[%s1868] sm:$0xff]
        %v1870 = vld [vmem:[%s1868 + $0x8] sm:$0xff]
        %v1871 = vld [vmem:[%s1868 + $0x10] sm:$0xff]
        %v1872 = vld [vmem:[%s1868 + $0x18] sm:$0xff]
        %1874 = vset.pattern.permute.xlu0 0
        %1875 = vperm.xlu0 %1874, %v1869
        %v1876 = vpop.permute.xlu0 %1875
        %1879 = vset.pattern.permute.xlu0 0
        %1880 = vperm.xlu0 %1879, %v1870
        %v1881 = vpop.permute.xlu0 %1880
        %1884 = vset.pattern.permute.xlu0 0
        %1885 = vperm.xlu0 %1884, %v1871
        %v1886 = vpop.permute.xlu0 %1885
        %1889 = vset.pattern.permute.xlu0 0
        %1890 = vperm.xlu0 %1889, %v1872
        %v1891 = vpop.permute.xlu0 %1890
        %v1893 = vmul.f32 %v1860, %v1876
        %v1894 = vmul.f32 %v1861, %v1876
        %v1895 = vmul.f32 %v1862, %v1881
        %v1896 = vmul.f32 %v1863, %v1881
        %v1897 = vmul.f32 %v1864, %v1886
        %v1898 = vmul.f32 %v1865, %v1886
        %v1899 = vmul.f32 %v1866, %v1891
        %v1900 = vmul.f32 %v1867, %v1891
        %v1901 = vadd.f32 %v1828, %v1893
        %v1902 = vadd.f32 %v1829, %v1894
        %v1903 = vadd.f32 %v1830, %v1895
        %v1904 = vadd.f32 %v1831, %v1896
        %v1905 = vadd.f32 %v1832, %v1897
        %v1906 = vadd.f32 %v1833, %v1898
        %v1907 = vadd.f32 %v1834, %v1899
        %v1908 = vadd.f32 %v1835, %v1900
        %1909 = vrot.lane.b32.xlu0 %v1430, 112
        %v1910 = vpop.permute.xlu0 %1909
        %1911 = vrot.lane.b32.xlu0 %v1432, 112
        %v1912 = vpop.permute.xlu0 %1911
        %1913 = vrot.lane.b32.xlu0 %v1434, 112
        %v1914 = vpop.permute.xlu0 %1913
        %1915 = vrot.lane.b32.xlu0 %v1436, 112
        %v1916 = vpop.permute.xlu0 %1915
        %1917 = vrot.lane.b32.xlu0 %v1431, 112
        %v1918 = vpop.permute.xlu0 %1917
        %1919 = vrot.lane.b32.xlu0 %v1433, 112
        %v1920 = vpop.permute.xlu0 %1919
        %1921 = vrot.lane.b32.xlu0 %v1435, 112
        %v1922 = vpop.permute.xlu0 %1921
        %1923 = vrot.lane.b32.xlu0 %v1437, 112
        %v1924 = vpop.permute.xlu0 %1923
        %v1925 = vsel %vm1062, %v1910, %v1918
        %v1926 = vsel %vm1062, %v1912, %v1920
        %v1927 = vsel %vm1062, %v1914, %v1922
        %v1928 = vsel %vm1062, %v1916, %v1924
        %v1929 = vsel %vm1062, %v1918, %v1910
        %v1930 = vsel %vm1062, %v1920, %v1912
        %v1931 = vsel %vm1062, %v1922, %v1914
        %v1932 = vsel %vm1062, %v1924, %v1916
        %v1933 = vmul.f32 %v1925, %v1077
        %v1934 = vmul.f32 %v1929, %v1081
        %v1935 = vmul.f32 %v1926, %v1077
        %v1936 = vmul.f32 %v1930, %v1081
        %v1937 = vmul.f32 %v1927, %v1077
        %v1938 = vmul.f32 %v1931, %v1081
        %v1939 = vmul.f32 %v1928, %v1077
        %v1940 = vmul.f32 %v1932, %v1081
        %s1941 = scalar_lea.vmem %s4, 512
        %v1942 = vld [vmem:[%s1941] sm:$0xff]
        %v1943 = vld [vmem:[%s1941 + $0x8] sm:$0xff]
        %v1944 = vld [vmem:[%s1941 + $0x10] sm:$0xff]
        %v1945 = vld [vmem:[%s1941 + $0x18] sm:$0xff]
        %1947 = vset.pattern.permute.xlu0 0
        %1948 = vperm.xlu0 %1947, %v1942
        %v1949 = vpop.permute.xlu0 %1948
        %1952 = vset.pattern.permute.xlu0 0
        %1953 = vperm.xlu0 %1952, %v1943
        %v1954 = vpop.permute.xlu0 %1953
        %1957 = vset.pattern.permute.xlu0 0
        %1958 = vperm.xlu0 %1957, %v1944
        %v1959 = vpop.permute.xlu0 %1958
        %1962 = vset.pattern.permute.xlu0 0
        %1963 = vperm.xlu0 %1962, %v1945
        %v1964 = vpop.permute.xlu0 %1963
        %v1966 = vmul.f32 %v1933, %v1949
        %v1967 = vmul.f32 %v1934, %v1949
        %v1968 = vmul.f32 %v1935, %v1954
        %v1969 = vmul.f32 %v1936, %v1954
        %v1970 = vmul.f32 %v1937, %v1959
        %v1971 = vmul.f32 %v1938, %v1959
        %v1972 = vmul.f32 %v1939, %v1964
        %v1973 = vmul.f32 %v1940, %v1964
        %v1974 = vadd.f32 %v1901, %v1966
        %v1975 = vadd.f32 %v1902, %v1967
        %v1976 = vadd.f32 %v1903, %v1968
        %v1977 = vadd.f32 %v1904, %v1969
        %v1978 = vadd.f32 %v1905, %v1970
        %v1979 = vadd.f32 %v1906, %v1971
        %v1980 = vadd.f32 %v1907, %v1972
        %v1981 = vadd.f32 %v1908, %v1973
        %1982 = vrot.lane.b32.xlu0 %v1430, 111
        %v1983 = vpop.permute.xlu0 %1982
        %1984 = vrot.lane.b32.xlu0 %v1432, 111
        %v1985 = vpop.permute.xlu0 %1984
        %1986 = vrot.lane.b32.xlu0 %v1434, 111
        %v1987 = vpop.permute.xlu0 %1986
        %1988 = vrot.lane.b32.xlu0 %v1436, 111
        %v1989 = vpop.permute.xlu0 %1988
        %1990 = vrot.lane.b32.xlu0 %v1431, 111
        %v1991 = vpop.permute.xlu0 %1990
        %1992 = vrot.lane.b32.xlu0 %v1433, 111
        %v1993 = vpop.permute.xlu0 %1992
        %1994 = vrot.lane.b32.xlu0 %v1435, 111
        %v1995 = vpop.permute.xlu0 %1994
        %1996 = vrot.lane.b32.xlu0 %v1437, 111
        %v1997 = vpop.permute.xlu0 %1996
        %v1998 = vsel %vm1149, %v1983, %v1991
        %v1999 = vsel %vm1149, %v1985, %v1993
        %v2000 = vsel %vm1149, %v1987, %v1995
        %v2001 = vsel %vm1149, %v1989, %v1997
        %v2002 = vsel %vm1149, %v1991, %v1983
        %v2003 = vsel %vm1149, %v1993, %v1985
        %v2004 = vsel %vm1149, %v1995, %v1987
        %v2005 = vsel %vm1149, %v1997, %v1989
        %v2006 = vmul.f32 %v1998, %v1164
        %v2007 = vmul.f32 %v2002, %v1168
        %v2008 = vmul.f32 %v1999, %v1164
        %v2009 = vmul.f32 %v2003, %v1168
        %v2010 = vmul.f32 %v2000, %v1164
        %v2011 = vmul.f32 %v2004, %v1168
        %v2012 = vmul.f32 %v2001, %v1164
        %v2013 = vmul.f32 %v2005, %v1168
        %s2014 = scalar_lea.vmem %s4, 544
        %v2015 = vld [vmem:[%s2014] sm:$0xff]
        %v2016 = vld [vmem:[%s2014 + $0x8] sm:$0xff]
        %v2017 = vld [vmem:[%s2014 + $0x10] sm:$0xff]
        %v2018 = vld [vmem:[%s2014 + $0x18] sm:$0xff]
        %2020 = vset.pattern.permute.xlu0 0
        %2021 = vperm.xlu0 %2020, %v2015
        %v2022 = vpop.permute.xlu0 %2021
        %2025 = vset.pattern.permute.xlu0 0
        %2026 = vperm.xlu0 %2025, %v2016
        %v2027 = vpop.permute.xlu0 %2026
        %2030 = vset.pattern.permute.xlu0 0
        %2031 = vperm.xlu0 %2030, %v2017
        %v2032 = vpop.permute.xlu0 %2031
        %2035 = vset.pattern.permute.xlu0 0
        %2036 = vperm.xlu0 %2035, %v2018
        %v2037 = vpop.permute.xlu0 %2036
        %v2039 = vmul.f32 %v2006, %v2022
        %v2040 = vmul.f32 %v2007, %v2022
        %v2041 = vmul.f32 %v2008, %v2027
        %v2042 = vmul.f32 %v2009, %v2027
        %v2043 = vmul.f32 %v2010, %v2032
        %v2044 = vmul.f32 %v2011, %v2032
        %v2045 = vmul.f32 %v2012, %v2037
        %v2046 = vmul.f32 %v2013, %v2037
        %v2047 = vadd.f32 %v1974, %v2039
        %v2048 = vadd.f32 %v1975, %v2040
        %v2049 = vadd.f32 %v1976, %v2041
        %v2050 = vadd.f32 %v1977, %v2042
        %v2051 = vadd.f32 %v1978, %v2043
        %v2052 = vadd.f32 %v1979, %v2044
        %v2053 = vadd.f32 %v1980, %v2045
        %v2054 = vadd.f32 %v1981, %v2046
        %s2055 = scalar_lea.vmem %s5, 32
        %v2056 = vld [vmem:[%s2055] sm:$0xff]
        %v2057 = vld [vmem:[%s2055 + $0x8] sm:$0xff]
        %v2058 = vld [vmem:[%s2055 + $0x10] sm:$0xff]
        %v2059 = vld [vmem:[%s2055 + $0x18] sm:$0xff]
        %2061 = vset.pattern.permute.xlu0 0
        %2062 = vperm.xlu0 %2061, %v2056
        %v2063 = vpop.permute.xlu0 %2062
        %2066 = vset.pattern.permute.xlu0 0
        %2067 = vperm.xlu0 %2066, %v2057
        %v2068 = vpop.permute.xlu0 %2067
        %2071 = vset.pattern.permute.xlu0 0
        %2072 = vperm.xlu0 %2071, %v2058
        %v2073 = vpop.permute.xlu0 %2072
        %2076 = vset.pattern.permute.xlu0 0
        %2077 = vperm.xlu0 %2076, %v2059
        %v2078 = vpop.permute.xlu0 %2077
        %v2080 = vadd.f32 %v2047, %v2063
        %v2081 = vadd.f32 %v2048, %v2063
        %v2082 = vadd.f32 %v2049, %v2068
        %v2083 = vadd.f32 %v2050, %v2068
        %v2084 = vadd.f32 %v2051, %v2073
        %v2085 = vadd.f32 %v2052, %v2073
        %v2086 = vadd.f32 %v2053, %v2078
        %v2087 = vadd.f32 %v2054, %v2078
        %v2088 = vadd.f32 %v2080, 3.0
        %v2089 = vadd.f32 %v2081, 3.0
        %v2090 = vadd.f32 %v2082, 3.0
        %v2091 = vadd.f32 %v2083, 3.0
        %v2092 = vadd.f32 %v2084, 3.0
        %v2093 = vadd.f32 %v2085, 3.0
        %v2094 = vadd.f32 %v2086, 3.0
        %v2095 = vadd.f32 %v2087, 3.0
        %v2096 = vmax.f32 %v2088, 0.0
        %v2097 = vmax.f32 %v2089, 0.0
        %v2098 = vmax.f32 %v2090, 0.0
        %v2099 = vmax.f32 %v2091, 0.0
        %v2100 = vmax.f32 %v2092, 0.0
        %v2101 = vmax.f32 %v2093, 0.0
        %v2102 = vmax.f32 %v2094, 0.0
        %v2103 = vmax.f32 %v2095, 0.0
        %v2104 = vmin.f32 %v2096, 6.0
        %v2105 = vmin.f32 %v2097, 6.0
        %v2106 = vmin.f32 %v2098, 6.0
        %v2107 = vmin.f32 %v2099, 6.0
        %v2108 = vmin.f32 %v2100, 6.0
        %v2109 = vmin.f32 %v2101, 6.0
        %v2110 = vmin.f32 %v2102, 6.0
        %v2111 = vmin.f32 %v2103, 6.0
        %v2112 = vmul.f32 %v2080, %v2104
        %v2113 = vmul.f32 %v2081, %v2105
        %v2114 = vmul.f32 %v2082, %v2106
        %v2115 = vmul.f32 %v2083, %v2107
        %v2116 = vmul.f32 %v2084, %v2108
        %v2117 = vmul.f32 %v2085, %v2109
        %v2118 = vmul.f32 %v2086, %v2110
        %v2119 = vmul.f32 %v2087, %v2111
        %v2120 = vmul.f32 %v2112, 0.16666667
        %v2121 = vmul.f32 %v2113, 0.16666667
        %v2122 = vmul.f32 %v2114, 0.16666667
        %v2123 = vmul.f32 %v2115, 0.16666667
        %v2124 = vmul.f32 %v2116, 0.16666667
        %v2125 = vmul.f32 %v2117, 0.16666667
        %v2126 = vmul.f32 %v2118, 0.16666667
        %v2127 = vmul.f32 %v2119, 0.16666667
        %s2128 = scalar_lea.vmem %s6, 32
        %v2129 = vld [vmem:[%s2128] sm:$0xff]
        %v2130 = vld [vmem:[%s2128 + $0x8] sm:$0xff]
        %v2131 = vld [vmem:[%s2128 + $0x10] sm:$0xff]
        %v2132 = vld [vmem:[%s2128 + $0x18] sm:$0xff]
        %v2134 = vsel %vm1296, %v2129, 0
        %v2137 = vsel %vm1296, %v2130, 0
        %v2140 = vsel %vm1296, %v2131, 0
        %v2143 = vsel %vm1296, %v2132, 0
        %2145 = vmatprep.subr.mxu0 %v2121
        %2146 = vmatpush1.msra.mxu0 %v2120
        %2147 = vmatprep.subr.mxu0 %v2123
        %2148 = vmatpush1.msra.mxu0 %v2122
        %2149 = vmatprep.subr.mxu0 %v2125
        %2150 = vmatpush1.msra.mxu0 %v2124
        %2151 = vmatprep.subr.mxu0 %v2127
        %2152 = vmatpush1.msra.mxu0 %v2126
        %2153 = vmatprep.subr.mxu0 0.0
        %2154 = vmatpush1.msra.mxu0 0.0
        %2155 = vmatprep.subr.mxu0 0.0
        %2156 = vmatpush1.msra.mxu0 0.0
        %2157 = vmatprep.subr.mxu0 0.0
        %2158 = vmatpush1.msra.mxu0 0.0
        %2159 = vmatprep.subr.mxu0 0.0
        %2160 = vmatpush1.msra.mxu0 0.0
        %2161 = vmatprep.subr.mxu0 0.0
        %2162 = vmatpush1.msra.mxu0 0.0
        %2163 = vmatprep.subr.mxu0 0.0
        %2164 = vmatpush1.msra.mxu0 0.0
        %2165 = vmatprep.subr.mxu0 0.0
        %2166 = vmatpush1.msra.mxu0 0.0
        %2167 = vmatprep.subr.mxu0 0.0
        %2168 = vmatpush1.msra.mxu0 0.0
        %2169 = vmatprep.subr.mxu0 0.0
        %2170 = vmatpush1.msra.mxu0 0.0
        %2171 = vmatprep.subr.mxu0 0.0
        %2172 = vmatpush1.msra.mxu0 0.0
        %2173 = vmatprep.subr.mxu0 0.0
        %2174 = vmatpush1.msra.mxu0 0.0
        %2175 = vmatprep.subr.mxu0 0.0
        %2176 = vmatpush1.msra.mxu0 0.0
        %2177 = vmatprep.subr.mxu0 0.0
        %2178 = vmatpush1.msra.mxu0 0.0
        %2179 = vmatprep.subr.mxu0 0.0
        %2180 = vmatpush1.msra.mxu0 0.0
        %2181 = vmatprep.subr.mxu0 0.0
        %2182 = vmatpush1.msra.mxu0 0.0
        %2183 = vmatprep.subr.mxu0 0.0
        %2184 = vmatpush1.msra.mxu0 0.0
        %2185 = vmatprep.subr.mxu0 0.0
        %2186 = vmatpush1.msra.mxu0 0.0
        %2187 = vmatprep.subr.mxu0 0.0
        %2188 = vmatpush1.msra.mxu0 0.0
        %2189 = vmatprep.subr.mxu0 0.0
        %2190 = vmatpush1.msra.mxu0 0.0
        %2191 = vmatprep.subr.mxu0 0.0
        %2192 = vmatpush1.msra.mxu0 0.0
        %2193 = vmatprep.subr.mxu0 0.0
        %2194 = vmatpush1.msra.mxu0 0.0
        %2195 = vmatprep.subr.mxu0 0.0
        %2196 = vmatpush1.msra.mxu0 0.0
        %2197 = vmatprep.subr.mxu0 0.0
        %2198 = vmatpush1.msra.mxu0 0.0
        %2199 = vmatprep.subr.mxu0 0.0
        %2200 = vmatpush1.msra.mxu0 0.0
        %2201 = vmatprep.subr.mxu0 0.0
        %2202 = vmatpush1.msra.mxu0 0.0
        %2203 = vmatprep.subr.mxu0 0.0
        %2204 = vmatpush1.msra.mxu0 0.0
        %2205 = vmatprep.subr.mxu0 0.0
        %2206 = vmatpush1.msra.mxu0 0.0
        %2207 = vmatprep.subr.mxu0 0.0
        %2208 = vmatpush1.msra.mxu0 0.0
        %2209 = vmatprep.mubr.f32.mxu0 0.0
        %2210 = vmatmul.mubr.f32.gmra.mrb[0].mxu0 %v2134
        %v2211 = vpop.f32.mrb[0].mxu0
        %v2212 = vadd.f32 0.0, %v2211
        %v2213 = vpop.f32.mrb[0].mxu0
        %v2214 = vadd.f32 0.0, %v2213
        %2215 = vmatprep.mubr.f32.mxu0 0.0
        %2216 = vmatmul.mubr.f32.gmra.mrb[0].mxu0 %v2137
        %v2217 = vpop.f32.mrb[0].mxu0
        %v2218 = vadd.f32 0.0, %v2217
        %v2219 = vpop.f32.mrb[0].mxu0
        %v2220 = vadd.f32 0.0, %v2219
        %2221 = vmatprep.mubr.f32.mxu0 0.0
        %2222 = vmatmul.mubr.f32.gmra.mrb[0].mxu0 %v2140
        %v2223 = vpop.f32.mrb[0].mxu0
        %v2224 = vadd.f32 0.0, %v2223
        %v2225 = vpop.f32.mrb[0].mxu0
        %v2226 = vadd.f32 0.0, %v2225
        %2227 = vmatprep.mubr.f32.mxu0 0.0
        %2228 = vmatmul.mubr.f32.gmra.mrb[0].mxu0 %v2143
        %v2229 = vpop.f32.mrb[0].mxu0
        %v2230 = vadd.f32 0.0, %v2229
        %v2231 = vpop.f32.mrb[0].mxu0
        %v2232 = vadd.f32 0.0, %v2231
        %2233 = vdwg.mxu0
        %v2234 = vadd.f32 %v1430, %v2212
        %v2235 = vadd.f32 %v1431, %v2214
        %v2236 = vadd.f32 %v1432, %v2218
        %v2237 = vadd.f32 %v1433, %v2220
        %v2238 = vadd.f32 %v1434, %v2224
        %v2239 = vadd.f32 %v1435, %v2226
        %v2240 = vadd.f32 %v1436, %v2230
        %v2241 = vadd.f32 %v1437, %v2232
        %s2242 = scalar_lea.vmem %s7, 32
        %v2243 = vld [vmem:[%s2242] sm:$0xff]
        %v2244 = vld [vmem:[%s2242 + $0x8] sm:$0xff]
        %v2245 = vld [vmem:[%s2242 + $0x10] sm:$0xff]
        %v2246 = vld [vmem:[%s2242 + $0x18] sm:$0xff]
        %2248 = vset.pattern.permute.xlu0 0
        %2249 = vperm.xlu0 %2248, %v2243
        %v2250 = vpop.permute.xlu0 %2249
        %2253 = vset.pattern.permute.xlu0 0
        %2254 = vperm.xlu0 %2253, %v2244
        %v2255 = vpop.permute.xlu0 %2254
        %2258 = vset.pattern.permute.xlu0 0
        %2259 = vperm.xlu0 %2258, %v2245
        %v2260 = vpop.permute.xlu0 %2259
        %2263 = vset.pattern.permute.xlu0 0
        %2264 = vperm.xlu0 %2263, %v2246
        %v2265 = vpop.permute.xlu0 %2264
        %v2267 = vadd.f32 %v2234, %v2250
        %v2268 = vadd.f32 %v2235, %v2250
        %v2269 = vadd.f32 %v2236, %v2255
        %v2270 = vadd.f32 %v2237, %v2255
        %v2271 = vadd.f32 %v2238, %v2260
        %v2272 = vadd.f32 %v2239, %v2260
        %v2273 = vadd.f32 %v2240, %v2265
        %v2274 = vadd.f32 %v2241, %v2265
        %2275 = vst [vmem:[%s298] sm:$0xff] %v2267
        %2276 = vst [vmem:[%s298 + $0x8] sm:$0xff] %v2268
        %2277 = vst [vmem:[%s298 + $0x10] sm:$0xff] %v2269
        %2278 = vst [vmem:[%s298 + $0x18] sm:$0xff] %v2270
        %2279 = vst [vmem:[%s298 + $0x20] sm:$0xff] %v2271
        %2280 = vst [vmem:[%s298 + $0x28] sm:$0xff] %v2272
        %2281 = vst [vmem:[%s298 + $0x30] sm:$0xff] %v2273
        %2282 = vst [vmem:[%s298 + $0x38] sm:$0xff] %v2274
        %s2283 = sand.u32 %s203, 1
        %s2284 = scalar_lea.sflag [#allocation3], %s2283
        %s2285 = sand.u32 %s203, 1
        %s2286 = smul.addr %s2285, 64
        %s2287 = scalar_lea.vmem [#allocation2], %s2286
        // Predicated region
        $region53: #{tpu_custom_call.1} parent=51 // pred_check
          %p2288 = pneg %p213
        $region54: #{tpu_custom_call.1} parent=51 // pred_check_branch
          %2290 = sbr.rel (%p2288) target = $region56
        $region55: #{tpu_custom_call.1} parent=51 // pred_region
          %s2292 = ssub.s32 1024, 1024
          %2293 = vsyncadd %s2284, %s2292
          %s2294 = smul.addr %s22, 8
          %s2295 = smul.addr %s2294, 128
          %s2296 = scalar_lea.hbm %s8, %s2295
          %s2297 = sshll.u32 %s2287, 4
          %s2298 = int_to_ptr.vmem [resolvable:$true] %s2297
          %2303 = dma.vmem_to_hbm [thread:$0]  %s2298, 1024, %s2296, %s2284, 256, 256, 16
        $region56: #{tpu_custom_call.1} parent=51 // pred_fallthru
          _
      $region52: #{tpu_custom_call.1} parent=5 // pred_fallthru
        _
      %p2304 = scmp.le.s32.totalorder 2, %s17
      // Predicated region
      $region57: #{tpu_custom_call.1} parent=5 // pred_check
        %p2305 = pneg %p2304
      $region58: #{tpu_custom_call.1} parent=5 // pred_check_branch
        %2307 = sbr.rel (%p2305) target = $region60
      $region59: #{tpu_custom_call.1} parent=5 // pred_region
        %s2308 = ssub.s32 %s17, 2
        // Predicated region
        $region61: #{tpu_custom_call.1} parent=59 // pred_check
          %p2309 = pneg %p219
        $region62: #{tpu_custom_call.1} parent=59 // pred_check_branch
          %2311 = sbr.rel (%p2309) target = $region64
        $region63: #{tpu_custom_call.1} parent=59 // pred_region
          %s2312 = sand.u32 %s204, 1
          %s2313 = scalar_lea.sflag [#allocation3], %s2312
          %s2314 = sand.u32 %s204, 1
          %s2315 = smul.addr %s2314, 64
          %s2316 = scalar_lea.vmem [#allocation2], %s2315
          %2317 = dma.done %s2313, 1024
        $region64: #{tpu_custom_call.1} parent=59 // pred_fallthru
          _
      $region60: #{tpu_custom_call.1} parent=5 // pred_fallthru
        _
    $region6: #{tpu_custom_call.1} parent=1 // loop_footer
      %s21 = sadd.s32 1, %s17
    $region7: #{tpu_custom_call.1} parent=1 // loop_footer_branch
      %16 = sbr.rel target = $region3
    $region8: #{tpu_custom_call.1} parent=1 // loop_exit
      _
    %2318 = vsyncpa [#allocation3], 1
    %s2319 = scalar_lea.sflag [#allocation3], 1
    %2320 = vsyncpa %s2319, 1

</llo_original>
